<compile_context>
chip_gen: v5e
topology: v5e:2x2
jax: 0.10.0
libtpu: 0.0.40
codegen_flags: <defaults>
</compile_context>

<pallas_src>
import functools

import jax
import jax.numpy as jnp
from jax.experimental import pallas as pl
from jax.experimental.pallas import tpu as pltpu

COST_CLASS = 1.0
COST_BBOX = 1.0
COST_GIOU = 1.0


def _round_up(x, m):
    return ((x + m - 1) // m) * m


def _cost_kernel(logits_ref, pred_ref, onehot_ref, tgt_ref, c_ref, *,
                 cost_giou, bf16_matmul, approx_sigmoid, elementwise_bf16):
    # ---- classification cost.  (-cost_class) is folded into the one-hot
    # matrix host-side, so the MXU matmul directly yields
    #   -w_cls * sigmoid(logits)[:, tgt_cls]                        (TN, TM)
    x = logits_ref[...].astype(jnp.float32)
    if approx_sigmoid:
        # large class counts: keep the divide off the (saturated) VALU slot,
        # exp + approximate reciprocal both run on the EUP.
        prob = pl.reciprocal(1.0 + jnp.exp(-x), approx=True)
    else:
        prob = jax.nn.sigmoid(x)
    onehot = onehot_ref[...]
    if bf16_matmul:                       # onehot is already bf16 host-side
        prob = prob.astype(jnp.bfloat16)
    c = jnp.dot(prob, onehot, preferred_element_type=jnp.float32)    # (TN, TM)

    cdt = jnp.bfloat16 if elementwise_bf16 else jnp.float32
    p = pred_ref[...].astype(cdt)         # (TN, 16) prediction geometry
    t = tgt_ref[...].astype(cdt)          # (16, TM) target geometry

    # ---- L1 cdist.  cost_bbox is pre-folded into cols/rows 0-3 host-side,
    # so this is pure abs-diff accumulation (no per-element weight multiply).
    l1 = (jnp.abs(p[:, 0:1] - t[0:1, :]) + jnp.abs(p[:, 1:2] - t[1:2, :])
          + jnp.abs(p[:, 2:3] - t[2:3, :]) + jnp.abs(p[:, 3:4] - t[3:4, :]))

    # ---- generalized IoU from precomputed corners / areas.
    px1, py1, px2, py2 = p[:, 4:5], p[:, 5:6], p[:, 6:7], p[:, 7:8]
    area_p = p[:, 8:9]
    tx1, ty1, tx2, ty2 = t[4:5, :], t[5:6, :], t[6:7, :], t[7:8, :]
    area_t = t[8:9, :]

    inter = (jnp.maximum(jnp.minimum(px2, tx2) - jnp.maximum(px1, tx1), 0.0)
             * jnp.maximum(jnp.minimum(py2, ty2) - jnp.maximum(py1, ty1), 0.0))
    union = (area_p + area_t) - inter
    # enclosing-box width/height: max(x2,x2') - min(x1,x1') >= 0 whenever each
    # box individually satisfies x2 >= x1 (valid cxcywh, w >= 0) -> no clamps.
    enc = ((jnp.maximum(px2, tx2) - jnp.minimum(px1, tx1))
           * (jnp.maximum(py2, ty2) - jnp.minimum(py1, ty1)))

    l1 = l1.astype(jnp.float32)
    inter = inter.astype(jnp.float32)
    union = union.astype(jnp.float32)
    enc = enc.astype(jnp.float32)

    # giou = iou - (enc - union)/enc ;  cost term is  w_giou * (-giou).
    # Divides run on the EUP via approximate reciprocal (frees the VALU slot).
    iou = inter * pl.reciprocal(union, approx=True)
    penalty = (enc - union) * pl.reciprocal(enc, approx=True)
    giou_cost = penalty - iou
    if cost_giou == 1.0:
        c = c + l1 + giou_cost
    elif cost_giou != 0.0:
        c = c + l1 + cost_giou * giou_cost
    else:
        c = c + l1

    c_ref[...] = c.astype(c_ref.dtype)


def _tpu_vmem_capacity_bytes():
    try:
        return int(pltpu.get_tpu_info().vmem_capacity_bytes)
    except Exception:
        return None


def hungarian_cost_matrix(det_logits, det_boxes, tgt_cls, tgt_bbox, *,
                          cost_class=COST_CLASS, cost_bbox=COST_BBOX,
                          cost_giou=COST_GIOU, tile_n=None, tile_m=None,
                          elementwise_bf16=False):
    """DETR matching cost matrix C with a Pallas TPU kernel.

    det_logits: (bs, num_queries, num_classes) f32
    det_boxes : (bs, num_queries, 4)  cxcywh (w, h >= 0; weights >= 0)
    tgt_cls   : (M,) int32  concatenated target classes over the batch
    tgt_bbox  : (M, 4)      concatenated target boxes (cxcywh)
    Returns C : (bs, num_queries, M) f32.
    """
    bs, nq, num_classes = det_logits.shape
    n = bs * nq
    m = int(tgt_bbox.shape[0])

    # ---- generation-aware VMEM budget / TensorCore count.  Heuristic on
    # per-core VMEM capacity: 128 MiB => v5e/v6e (1 TC), <= 64 MiB => v7x-class
    # (2 TCs, smaller VMEM).  Unknown backend -> conservative defaults.
    cap = _tpu_vmem_capacity_bytes()
    if cap is None:
        vmem_limit, vmem_budget, num_tc = 32 << 20, 24 << 20, 1
    elif cap >= (128 << 20):
        vmem_limit, vmem_budget, num_tc = 100 << 20, 72 << 20, 1
    else:
        vmem_limit = min(48 << 20, int(cap * 3 // 4))
        vmem_budget = int(vmem_limit * 3 // 4)
        num_tc = 2

    # ---- lane-dense target axis: tile_m multiple of 128, M padded to it.
    m128 = max(_round_up(m, 128), 128)
    if tile_m is None:
        tile_m = m128 if m128 <= 2048 else 2048
    tile_m = max(128, (int(tile_m) // 128) * 128)

    cc_pad = _round_up(num_classes, 128)

    def vmem_need(tn, tm):
        # double-buffered streamed blocks + (double-buffered) constant blocks
        # + the ~9 live (TN, TM) f32 temporaries in the kernel body.
        const = (2 * _round_up(num_classes, 8) * tm + 2 * 16 * tm) * 4
        per_row = (2 * cc_pad + 2 * 128 + 2 * tm + 9 * tm) * 4
        return const + tn * per_row

    while tile_m > 128 and vmem_need(8, tile_m) > vmem_budget:
        tile_m = max(128, ((tile_m // 2) // 128) * 128)
    m_pad = _round_up(m, tile_m)

    # ---- prediction-axis tile: largest multiple of 8 that fits the budget.
    if tile_n is None:
        tile_n = 1024
        while tile_n > 8 and vmem_need(tile_n, tile_m) > vmem_budget:
            tile_n //= 2
        tile_n = min(tile_n, _round_up(n, 8))     # don't over-pad tiny N
    tile_n = max(8, (int(tile_n) // 8) * 8)

    # ---- 2-TC chips only: aim for an EVEN total grid-step count so both
    # TensorCores get work; single-TC chips keep the largest tile (fewest steps).
    if num_tc >= 2 and (m_pad // tile_m) % 2 != 0:
        cand = tile_n
        for _ in range(4):
            if (_round_up(n, cand) // cand) % 2 == 0:
                tile_n = cand
                break
            nxt = max(8, ((cand // 2) // 8) * 8)
            if nxt == cand:
                break
            cand = nxt
    n_pad = _round_up(n, tile_n)

    # ---- host-side glue (one-time work outside the per-tile hot loop) ------
    w_bbox = float(cost_bbox)
    logits_flat = det_logits.reshape(n, num_classes).astype(jnp.float32)
    if n_pad != n:
        logits_flat = jnp.pad(logits_flat, ((0, n_pad - n), (0, 0)))

    b = det_boxes.reshape(n, 4).astype(jnp.float32)
    pred_rows = jnp.stack(
        [w_bbox * b[:, 0], w_bbox * b[:, 1], w_bbox * b[:, 2], w_bbox * b[:, 3],
         b[:, 0] - 0.5 * b[:, 2], b[:, 1] - 0.5 * b[:, 3],
         b[:, 0] + 0.5 * b[:, 2], b[:, 1] + 0.5 * b[:, 3],
         b[:, 2] * b[:, 3]], axis=1)                                    # (n, 9)
    pred_geom = jnp.zeros((n_pad, 16), jnp.float32).at[:n, :9].set(pred_rows)

    # class gather as an MXU matmul prob @ onehot; fold -cost_class into it.
    bf16_matmul = num_classes >= 128
    oh_dtype = jnp.bfloat16 if bf16_matmul else jnp.float32
    onehot = (-float(cost_class)) * jax.nn.one_hot(
        tgt_cls, num_classes, dtype=jnp.float32).T                      # (Cc, m)
    onehot = jnp.pad(onehot, ((0, 0), (0, m_pad - m))).astype(oh_dtype)

    # target geometry: rows 0-3 cost_bbox-scaled cxcywh, 4-7 xyxy, 8 area.
    # Padded columns carry a benign unit box -> finite costs (no inf/NaN).
    t = tgt_bbox.astype(jnp.float32)
    tgt_rows = jnp.stack(
        [w_bbox * t[:, 0], w_bbox * t[:, 1], w_bbox * t[:, 2], w_bbox * t[:, 3],
         t[:, 0] - 0.5 * t[:, 2], t[:, 1] - 0.5 * t[:, 3],
         t[:, 0] + 0.5 * t[:, 2], t[:, 1] + 0.5 * t[:, 3],
         t[:, 2] * t[:, 3]], axis=0)                                    # (9, m)
    tgt_geom = jnp.zeros((16, m_pad), jnp.float32)
    tgt_geom = tgt_geom.at[6:9, :].set(1.0)          # pad: x2 = y2 = area = 1
    tgt_geom = tgt_geom.at[:9, :m].set(tgt_rows)

    kernel = functools.partial(
        _cost_kernel, cost_giou=float(cost_giou), bf16_matmul=bf16_matmul,
        approx_sigmoid=num_classes >= 128,
        elementwise_bf16=bool(elementwise_bf16))

    grid = (n_pad // tile_n, m_pad // tile_m)
    cost_estimate = pl.CostEstimate(
        flops=int(2 * n_pad * num_classes * m_pad + 45 * n_pad * m_pad),
        transcendentals=int(n_pad * num_classes + 2 * n_pad * m_pad),
        bytes_accessed=int(4 * (n_pad * num_classes + 16 * n_pad
                                + num_classes * m_pad + 16 * m_pad
                                + n_pad * m_pad)))

    c = pl.pallas_call(
        kernel,
        out_shape=jax.ShapeDtypeStruct((n_pad, m_pad), jnp.float32),
        grid_spec=pltpu.PrefetchScalarGridSpec(
            num_scalar_prefetch=0,
            grid=grid,
            in_specs=[
                pl.BlockSpec((tile_n, num_classes), lambda i, j: (i, 0)),
                pl.BlockSpec((tile_n, 16), lambda i, j: (i, 0)),
                # target-side constants: only their M-tile changes with j.
                # TODO(synk): single-buffer these via pipeline_mode=pl.Buffered(1);
                # their double-buffered footprint is already counted in vmem_need.
                pl.BlockSpec((num_classes, tile_m), lambda i, j: (0, j)),
                pl.BlockSpec((16, tile_m), lambda i, j: (0, j)),
            ],
            out_specs=pl.BlockSpec((tile_n, tile_m), lambda i, j: (i, j)),
        ),
        compiler_params=pltpu.CompilerParams(
            dimension_semantics=("parallel", "parallel"),
            vmem_limit_bytes=int(vmem_limit)),
        cost_estimate=cost_estimate,
    )(logits_flat, pred_geom, onehot, tgt_geom)

    return c[:n, :m].reshape(bs, nq, m)


# ------------------------------ reference (pure jnp, for validation) ----------
def _box_cxcywh_to_xyxy(b):
    cx, cy, w, h = b[..., 0], b[..., 1], b[..., 2], b[..., 3]
    return jnp.stack([cx - 0.5 * w, cy - 0.5 * h, cx + 0.5 * w, cy + 0.5 * h], -1)


def _ref_cost(det_logits, det_boxes, tgt_cls, tgt_bbox):
    bs, nq, _ = det_logits.shape
    out_prob = jax.nn.sigmoid(det_logits.reshape(bs * nq, -1))
    out_bbox = det_boxes.reshape(bs * nq, 4)
    cost_class = -out_prob[:, tgt_cls]
    cost_bbox = jnp.sum(jnp.abs(out_bbox[:, None, :] - tgt_bbox[None, :, :]), -1)
    p = _box_cxcywh_to_xyxy(out_bbox)[:, None, :]
    t = _box_cxcywh_to_xyxy(tgt_bbox)[None, :, :]
    area_p = (p[..., 2] - p[..., 0]) * (p[..., 3] - p[..., 1])
    area_t = (t[..., 2] - t[..., 0]) * (t[..., 3] - t[..., 1])
    inter = (jnp.clip(jnp.minimum(p[..., 2], t[..., 2])
                      - jnp.maximum(p[..., 0], t[..., 0]), 0)
             * jnp.clip(jnp.minimum(p[..., 3], t[..., 3])
                        - jnp.maximum(p[..., 1], t[..., 1]), 0))
    union = area_p + area_t - inter
    iou = inter / union
    enc = (jnp.clip(jnp.maximum(p[..., 2], t[..., 2])
                    - jnp.minimum(p[..., 0], t[..., 0]), 0)
           * jnp.clip(jnp.maximum(p[..., 3], t[..., 3])
                      - jnp.minimum(p[..., 1], t[..., 1]), 0))
    giou = iou - (enc - union) / enc
    C = COST_BBOX * cost_bbox + COST_CLASS * cost_class + COST_GIOU * (-giou)
    return C.reshape(bs, nq, -1)


if __name__ == "__main__":
    key = jax.random.PRNGKey(0)
    bs, num_queries, num_classes, num_targets = 2, 64, 16, 8

    k1, k2, k3, k4, k5 = jax.random.split(key, 5)
    det_logits = jax.random.normal(k1, (bs, num_queries, num_classes),
                                   dtype=jnp.float32)
    box_c = jax.random.uniform(k2, (bs, num_queries, 2), minval=0.2, maxval=0.8)
    box_wh = jax.random.uniform(k3, (bs, num_queries, 2), minval=0.05, maxval=0.3)
    det_boxes = jnp.concatenate([box_c, box_wh], axis=-1).astype(jnp.float32)

    tgt_cls = jax.random.randint(k4, (num_targets,), 0, num_classes,
                                 dtype=jnp.int32)
    t_c = jax.random.uniform(k5, (num_targets, 2), minval=0.2, maxval=0.8)
    t_wh = jax.random.uniform(jax.random.fold_in(k5, 1), (num_targets, 2),
                              minval=0.05, maxval=0.3)
    tgt_bbox = jnp.concatenate([t_c, t_wh], axis=-1).astype(jnp.float32)

    C = jax.block_until_ready(
        hungarian_cost_matrix(det_logits, det_boxes, tgt_cls, tgt_bbox))
    C_ref = _ref_cost(det_logits, det_boxes, tgt_cls, tgt_bbox)
    assert C.shape == (bs, num_queries, num_targets)
    # pl.reciprocal(approx=True) in the IoU terms -> ~1e-3 relative error
    # (fine for argmin matching).
    max_err = float(jnp.max(jnp.abs(C - C_ref)))
    assert max_err < 2e-2, f"f32 path mismatch vs reference, max_err={max_err}"

    # opt-in bf16 elementwise path (v6e/v7x VALU win); smoke-check only — the
    # L1/GIoU terms are computed in bf16, so tolerance is loose but still far
    # below the O(1) magnitude of any missing/incorrect cost term.
    C_bf16 = jax.block_until_ready(hungarian_cost_matrix(
        det_logits, det_boxes, tgt_cls, tgt_bbox, elementwise_bf16=True))
    max_err_bf16 = float(jnp.max(jnp.abs(C_bf16 - C_ref)))
    assert max_err_bf16 < 2.5e-1, f"bf16 path mismatch, max_err={max_err_bf16}"

    # TODO(synk): scipy.optimize.linear_sum_assignment (Hungarian algorithm), the
    # per-batch split, invalid-target masking and nan_to_num bookkeeping are
    # sequential host-side steps with no Pallas equivalent; only the cost matrix
    # C is computed on TPU here.
    print("KERNEL_OK")
</pallas_src>

<mosaic_0001>
module attributes {stable_mosaic.version = 11 : i64} {
  func.func @_cost_kernel(%arg0: i32, %arg1: i32, %arg2: memref<128x16xf32, #tpu.memory_space<vmem>>, %arg3: memref<128x16xf32, #tpu.memory_space<vmem>>, %arg4: memref<16x128xf32, #tpu.memory_space<vmem>>, %arg5: memref<16x128xf32, #tpu.memory_space<vmem>>, %arg6: memref<128x128xf32, #tpu.memory_space<vmem>>) attributes {dimension_semantics = [#tpu.dimension_semantics<parallel>, #tpu.dimension_semantics<parallel>], iteration_bounds = array<i64: 1, 1>, scalar_prefetch = 0 : i64, scratch_operands = 0 : i64, tpu.core_type = #tpu.core_type<tc>, window_params = [{transform_indices = @transform_0, window_bounds = array<i64: 128, 16>}, {transform_indices = @transform_1, window_bounds = array<i64: 128, 16>}, {transform_indices = @transform_2, window_bounds = array<i64: 16, 128>}, {transform_indices = @transform_3, window_bounds = array<i64: 16, 128>}, {transform_indices = @transform_4, window_bounds = array<i64: 128, 128>}]} {
    %c0 = arith.constant 0 : index
    %c0_0 = arith.constant 0 : index
    %0 = vector.load %arg2[%c0, %c0_0] : memref<128x16xf32, #tpu.memory_space<vmem>>, vector<128x16xf32>
    %1 = arith.negf %0 : vector<128x16xf32>
    %2 = math.exp %1 : vector<128x16xf32>
    %cst = arith.constant 1.000000e+00 : f32
    %3 = vector.broadcast %cst : f32 to vector<128x16xf32>
    %4 = arith.addf %3, %2 : vector<128x16xf32>
    %5 = arith.divf %3, %4 : vector<128x16xf32>
    %c0_1 = arith.constant 0 : index
    %c0_2 = arith.constant 0 : index
    %6 = vector.load %arg4[%c0_1, %c0_2] : memref<16x128xf32, #tpu.memory_space<vmem>>, vector<16x128xf32>
    %cst_3 = arith.constant dense<0.000000e+00> : vector<128x128xf32>
    %7 = tpu.matmul %5, %6, %cst_3 {dimension_numbers = #tpu.dot_dimension_numbers<[1], [0], [0], [1], [0, 0, 1, 1], [], []>} : vector<128x16xf32>, vector<16x128xf32>, vector<128x128xf32> -> vector<128x128xf32>
    %c0_4 = arith.constant 0 : index
    %c0_5 = arith.constant 0 : index
    %8 = vector.load %arg3[%c0_4, %c0_5] : memref<128x16xf32, #tpu.memory_space<vmem>>, vector<128x16xf32>
    %c0_6 = arith.constant 0 : index
    %c0_7 = arith.constant 0 : index
    %9 = vector.load %arg5[%c0_6, %c0_7] : memref<16x128xf32, #tpu.memory_space<vmem>>, vector<16x128xf32>
    %10 = vector.extract_strided_slice %8 {offsets = [0, 0], sizes = [128, 1], strides = [1, 1]} : vector<128x16xf32> to vector<128x1xf32>
    %11 = vector.extract_strided_slice %9 {offsets = [0, 0], sizes = [1, 128], strides = [1, 1]} : vector<16x128xf32> to vector<1x128xf32>
    %12 = vector.broadcast %10 : vector<128x1xf32> to vector<128x128xf32>
    %13 = vector.broadcast %11 : vector<1x128xf32> to vector<128x128xf32>
    %14 = arith.subf %12, %13 : vector<128x128xf32>
    %15 = math.absf %14 : vector<128x128xf32>
    %16 = vector.extract_strided_slice %8 {offsets = [0, 1], sizes = [128, 1], strides = [1, 1]} : vector<128x16xf32> to vector<128x1xf32>
    %17 = vector.extract_strided_slice %9 {offsets = [1, 0], sizes = [1, 128], strides = [1, 1]} : vector<16x128xf32> to vector<1x128xf32>
    %18 = vector.broadcast %16 : vector<128x1xf32> to vector<128x128xf32>
    %19 = vector.broadcast %17 : vector<1x128xf32> to vector<128x128xf32>
    %20 = arith.subf %18, %19 : vector<128x128xf32>
    %21 = math.absf %20 : vector<128x128xf32>
    %22 = arith.addf %15, %21 : vector<128x128xf32>
    %23 = vector.extract_strided_slice %8 {offsets = [0, 2], sizes = [128, 1], strides = [1, 1]} : vector<128x16xf32> to vector<128x1xf32>
    %24 = vector.extract_strided_slice %9 {offsets = [2, 0], sizes = [1, 128], strides = [1, 1]} : vector<16x128xf32> to vector<1x128xf32>
    %25 = vector.broadcast %23 : vector<128x1xf32> to vector<128x128xf32>
    %26 = vector.broadcast %24 : vector<1x128xf32> to vector<128x128xf32>
    %27 = arith.subf %25, %26 : vector<128x128xf32>
    %28 = math.absf %27 : vector<128x128xf32>
    %29 = arith.addf %22, %28 : vector<128x128xf32>
    %30 = vector.extract_strided_slice %8 {offsets = [0, 3], sizes = [128, 1], strides = [1, 1]} : vector<128x16xf32> to vector<128x1xf32>
    %31 = vector.extract_strided_slice %9 {offsets = [3, 0], sizes = [1, 128], strides = [1, 1]} : vector<16x128xf32> to vector<1x128xf32>
    %32 = vector.broadcast %30 : vector<128x1xf32> to vector<128x128xf32>
    %33 = vector.broadcast %31 : vector<1x128xf32> to vector<128x128xf32>
    %34 = arith.subf %32, %33 : vector<128x128xf32>
    %35 = math.absf %34 : vector<128x128xf32>
    %36 = arith.addf %29, %35 : vector<128x128xf32>
    %37 = vector.extract_strided_slice %8 {offsets = [0, 4], sizes = [128, 1], strides = [1, 1]} : vector<128x16xf32> to vector<128x1xf32>
    %38 = vector.extract_strided_slice %8 {offsets = [0, 5], sizes = [128, 1], strides = [1, 1]} : vector<128x16xf32> to vector<128x1xf32>
    %39 = vector.extract_strided_slice %8 {offsets = [0, 6], sizes = [128, 1], strides = [1, 1]} : vector<128x16xf32> to vector<128x1xf32>
    %40 = vector.extract_strided_slice %8 {offsets = [0, 7], sizes = [128, 1], strides = [1, 1]} : vector<128x16xf32> to vector<128x1xf32>
    %41 = vector.extract_strided_slice %8 {offsets = [0, 8], sizes = [128, 1], strides = [1, 1]} : vector<128x16xf32> to vector<128x1xf32>
    %42 = vector.extract_strided_slice %9 {offsets = [4, 0], sizes = [1, 128], strides = [1, 1]} : vector<16x128xf32> to vector<1x128xf32>
    %43 = vector.extract_strided_slice %9 {offsets = [5, 0], sizes = [1, 128], strides = [1, 1]} : vector<16x128xf32> to vector<1x128xf32>
    %44 = vector.extract_strided_slice %9 {offsets = [6, 0], sizes = [1, 128], strides = [1, 1]} : vector<16x128xf32> to vector<1x128xf32>
    %45 = vector.extract_strided_slice %9 {offsets = [7, 0], sizes = [1, 128], strides = [1, 1]} : vector<16x128xf32> to vector<1x128xf32>
    %46 = vector.extract_strided_slice %9 {offsets = [8, 0], sizes = [1, 128], strides = [1, 1]} : vector<16x128xf32> to vector<1x128xf32>
    %47 = vector.broadcast %39 : vector<128x1xf32> to vector<128x128xf32>
    %48 = vector.broadcast %44 : vector<1x128xf32> to vector<128x128xf32>
    %49 = arith.minimumf %47, %48 : vector<128x128xf32>
    %50 = vector.broadcast %37 : vector<128x1xf32> to vector<128x128xf32>
    %51 = vector.broadcast %42 : vector<1x128xf32> to vector<128x128xf32>
    %52 = arith.maximumf %50, %51 : vector<128x128xf32>
    %53 = arith.subf %49, %52 : vector<128x128xf32>
    %cst_8 = arith.constant 0.000000e+00 : f32
    %54 = vector.broadcast %cst_8 : f32 to vector<128x128xf32>
    %55 = arith.maximumf %53, %54 : vector<128x128xf32>
    %56 = vector.broadcast %40 : vector<128x1xf32> to vector<128x128xf32>
    %57 = vector.broadcast %45 : vector<1x128xf32> to vector<128x128xf32>
    %58 = arith.minimumf %56, %57 : vector<128x128xf32>
    %59 = vector.broadcast %38 : vector<128x1xf32> to vector<128x128xf32>
    %60 = vector.broadcast %43 : vector<1x128xf32> to vector<128x128xf32>
    %61 = arith.maximumf %59, %60 : vector<128x128xf32>
    %62 = arith.subf %58, %61 : vector<128x128xf32>
    %cst_9 = arith.constant 0.000000e+00 : f32
    %63 = vector.broadcast %cst_9 : f32 to vector<128x128xf32>
    %64 = arith.maximumf %62, %63 : vector<128x128xf32>
    %65 = arith.mulf %55, %64 : vector<128x128xf32>
    %66 = vector.broadcast %41 : vector<128x1xf32> to vector<128x128xf32>
    %67 = vector.broadcast %46 : vector<1x128xf32> to vector<128x128xf32>
    %68 = arith.addf %66, %67 : vector<128x128xf32>
    %69 = arith.subf %68, %65 : vector<128x128xf32>
    %70 = vector.broadcast %39 : vector<128x1xf32> to vector<128x128xf32>
    %71 = vector.broadcast %44 : vector<1x128xf32> to vector<128x128xf32>
    %72 = arith.maximumf %70, %71 : vector<128x128xf32>
    %73 = vector.broadcast %37 : vector<128x1xf32> to vector<128x128xf32>
    %74 = vector.broadcast %42 : vector<1x128xf32> to vector<128x128xf32>
    %75 = arith.minimumf %73, %74 : vector<128x128xf32>
    %76 = arith.subf %72, %75 : vector<128x128xf32>
    %77 = vector.broadcast %40 : vector<128x1xf32> to vector<128x128xf32>
    %78 = vector.broadcast %45 : vector<1x128xf32> to vector<128x128xf32>
    %79 = arith.maximumf %77, %78 : vector<128x128xf32>
    %80 = vector.broadcast %38 : vector<128x1xf32> to vector<128x128xf32>
    %81 = vector.broadcast %43 : vector<1x128xf32> to vector<128x128xf32>
    %82 = arith.minimumf %80, %81 : vector<128x128xf32>
    %83 = arith.subf %79, %82 : vector<128x128xf32>
    %84 = arith.mulf %76, %83 : vector<128x128xf32>
    %85 = tpu.reciprocal %69 {approx = true} : vector<128x128xf32> -> vector<128x128xf32>
    %86 = arith.mulf %65, %85 : vector<128x128xf32>
    %87 = arith.subf %84, %69 : vector<128x128xf32>
    %88 = tpu.reciprocal %84 {approx = true} : vector<128x128xf32> -> vector<128x128xf32>
    %89 = arith.mulf %87, %88 : vector<128x128xf32>
    %90 = arith.subf %89, %86 : vector<128x128xf32>
    %91 = arith.addf %7, %36 : vector<128x128xf32>
    %92 = arith.addf %91, %90 : vector<128x128xf32>
    %c0_10 = arith.constant 0 : index
    %c0_11 = arith.constant 0 : index
    %93 = vector.load %arg6[%c0_10, %c0_11] : memref<128x128xf32, #tpu.memory_space<vmem>>, vector<128x128xf32>
    tpu.vector_store %arg6[%c0_10, %c0_11], %92 {strides = array<i32>} : memref<128x128xf32, #tpu.memory_space<vmem>>, vector<128x128xf32>,
    return
  }
  func.func @transform_0(%arg0: i32, %arg1: i32) -> (i32, i32) {
    %c0_i32 = arith.constant 0 : i32
    %c0_i32_0 = arith.constant 0 : i32
    return %arg0, %c0_i32 : i32, i32
  }
  func.func @transform_1(%arg0: i32, %arg1: i32) -> (i32, i32) {
    %c0_i32 = arith.constant 0 : i32
    %c0_i32_0 = arith.constant 0 : i32
    return %arg0, %c0_i32 : i32, i32
  }
  func.func @transform_2(%arg0: i32, %arg1: i32) -> (i32, i32) {
    %c0_i32 = arith.constant 0 : i32
    %c0_i32_0 = arith.constant 0 : i32
    return %c0_i32, %arg1 : i32, i32
  }
  func.func @transform_3(%arg0: i32, %arg1: i32) -> (i32, i32) {
    %c0_i32 = arith.constant 0 : i32
    %c0_i32_0 = arith.constant 0 : i32
    return %c0_i32, %arg1 : i32, i32
  }
  func.func @transform_4(%arg0: i32, %arg1: i32) -> (i32, i32) {
    %c0_i32 = arith.constant 0 : i32
    return %arg0, %arg1 : i32, i32
  }
}

</mosaic_0001>

<llo_original>
// kernel: tpu_custom_call.1
$region0: #{tpu_custom_call.1}
  #allocation0 [shape = 'u32[]', space=smem, size = 0x4, offset = 0x4, fixed_abs, tag = 'smem constant byte address 0x4 - core index']
  #allocation1 [shape = 'u32[72,128]{1,0:T(1,128)}', space=vmem, size = 0x9000, scoped, tag = 'internal scratch']
  %s0 = inlined_call_operand.vmem [shape: f32[128,16], index: 0, kind: input, shape index: {}]
  %s1 = inlined_call_operand.vmem [shape: f32[128,16], index: 1, kind: input, shape index: {}]
  %s2 = inlined_call_operand.vmem [shape: f32[16,128], index: 2, kind: input, shape index: {}]
  %s3 = inlined_call_operand.vmem [shape: f32[16,128], index: 3, kind: input, shape index: {}]
  %s4 = inlined_call_operand.hbm [shape: f32[128,128], index: 4, kind: output, shape index: {}]
  %s5 = sld [smem:[#allocation0]]
  $region26: #{tpu_custom_call.1} parent=0
    _
  %s7 = ssub.s32 1, %s5
  %s8 = scalar_select 0, %s7, %s5
  $region1: #{tpu_custom_call.1} parent=0
    #allocation2 [shape = 'u8[65536]{0}', space=vmem, size = 0x10000, scoped, tag = 'output window, operand 0, single buffered']
    #allocation3 [shape = 's32[1]{0}', space=sflag, size = 0x4, scoped, tag = 'scoped memory for tpu_custom_call.1']
    %9 = vsyncpa [#allocation3], 0
    // Predicated region
    $region2: #{tpu_custom_call.1} parent=1 // pred_check
      _
    $region3: #{tpu_custom_call.1} parent=1 // pred_check_branch
      %11 = sbr.rel (0) target = $region5
    $region4: #{tpu_custom_call.1} parent=1 // pred_region
      _
    $region5: #{tpu_custom_call.1} parent=1 // pred_fallthru
      _
    // Predicated region
    $region6: #{tpu_custom_call.1} parent=1 // pred_check
      _
    $region7: #{tpu_custom_call.1} parent=1 // pred_check_branch
      %13 = sbr.rel (0) target = $region9
    $region8: #{tpu_custom_call.1} parent=1 // pred_region
      _
    $region9: #{tpu_custom_call.1} parent=1 // pred_fallthru
      _
    // Predicated region
    $region10: #{tpu_custom_call.1} parent=1 // pred_check
      _
    $region11: #{tpu_custom_call.1} parent=1 // pred_check_branch
      %15 = sbr.rel (0) target = $region13
    $region12: #{tpu_custom_call.1} parent=1 // pred_region
      _
    $region13: #{tpu_custom_call.1} parent=1 // pred_fallthru
      _
    // Predicated region
    $region14: #{tpu_custom_call.1} parent=1 // pred_check
      _
    $region15: #{tpu_custom_call.1} parent=1 // pred_check_branch
      %17 = sbr.rel (0) target = $region17
    $region16: #{tpu_custom_call.1} parent=1 // pred_region
      _
    $region17: #{tpu_custom_call.1} parent=1 // pred_fallthru
      _
    %v18 = vld [vmem:[%s0] sm:$0xff]
    %v19 = vld [vmem:[%s0 + $0x8] sm:$0xff]
    %v20 = vld [vmem:[%s0 + $0x10] sm:$0xff]
    %v21 = vld [vmem:[%s0 + $0x18] sm:$0xff]
    %v22 = vld [vmem:[%s0 + $0x20] sm:$0xff]
    %v23 = vld [vmem:[%s0 + $0x28] sm:$0xff]
    %v24 = vld [vmem:[%s0 + $0x30] sm:$0xff]
    %v25 = vld [vmem:[%s0 + $0x38] sm:$0xff]
    %v26 = vld [vmem:[%s0 + $0x40] sm:$0xff]
    %v27 = vld [vmem:[%s0 + $0x48] sm:$0xff]
    %v28 = vld [vmem:[%s0 + $0x50] sm:$0xff]
    %v29 = vld [vmem:[%s0 + $0x58] sm:$0xff]
    %v30 = vld [vmem:[%s0 + $0x60] sm:$0xff]
    %v31 = vld [vmem:[%s0 + $0x68] sm:$0xff]
    %v32 = vld [vmem:[%s0 + $0x70] sm:$0xff]
    %v33 = vld [vmem:[%s0 + $0x78] sm:$0xff]
    %v34 = vxor.u32 %v18, 2147483648
    %v35 = vxor.u32 %v19, 2147483648
    %v36 = vxor.u32 %v20, 2147483648
    %v37 = vxor.u32 %v21, 2147483648
    %v38 = vxor.u32 %v22, 2147483648
    %v39 = vxor.u32 %v23, 2147483648
    %v40 = vxor.u32 %v24, 2147483648
    %v41 = vxor.u32 %v25, 2147483648
    %v42 = vxor.u32 %v26, 2147483648
    %v43 = vxor.u32 %v27, 2147483648
    %v44 = vxor.u32 %v28, 2147483648
    %v45 = vxor.u32 %v29, 2147483648
    %v46 = vxor.u32 %v30, 2147483648
    %v47 = vxor.u32 %v31, 2147483648
    %v48 = vxor.u32 %v32, 2147483648
    %v49 = vxor.u32 %v33, 2147483648
    %v50 = vmul.f32 %v34, 1.442695
    %v51 = vpow.pop %v50
    %v52 = vmul.f32 %v35, 1.442695
    %v53 = vpow.pop %v52
    %v54 = vmul.f32 %v36, 1.442695
    %v55 = vpow.pop %v54
    %v56 = vmul.f32 %v37, 1.442695
    %v57 = vpow.pop %v56
    %v58 = vmul.f32 %v38, 1.442695
    %v59 = vpow.pop %v58
    %v60 = vmul.f32 %v39, 1.442695
    %v61 = vpow.pop %v60
    %v62 = vmul.f32 %v40, 1.442695
    %v63 = vpow.pop %v62
    %v64 = vmul.f32 %v41, 1.442695
    %v65 = vpow.pop %v64
    %v66 = vmul.f32 %v42, 1.442695
    %v67 = vpow.pop %v66
    %v68 = vmul.f32 %v43, 1.442695
    %v69 = vpow.pop %v68
    %v70 = vmul.f32 %v44, 1.442695
    %v71 = vpow.pop %v70
    %v72 = vmul.f32 %v45, 1.442695
    %v73 = vpow.pop %v72
    %v74 = vmul.f32 %v46, 1.442695
    %v75 = vpow.pop %v74
    %v76 = vmul.f32 %v47, 1.442695
    %v77 = vpow.pop %v76
    %v78 = vmul.f32 %v48, 1.442695
    %v79 = vpow.pop %v78
    %v80 = vmul.f32 %v49, 1.442695
    %v81 = vpow.pop %v80
    %v82 = vadd.f32 %v51, 1.0
    %v83 = vadd.f32 %v53, 1.0
    %v84 = vadd.f32 %v55, 1.0
    %v85 = vadd.f32 %v57, 1.0
    %v86 = vadd.f32 %v59, 1.0
    %v87 = vadd.f32 %v61, 1.0
    %v88 = vadd.f32 %v63, 1.0
    %v89 = vadd.f32 %v65, 1.0
    %v90 = vadd.f32 %v67, 1.0
    %v91 = vadd.f32 %v69, 1.0
    %v92 = vadd.f32 %v71, 1.0
    %v93 = vadd.f32 %v73, 1.0
    %v94 = vadd.f32 %v75, 1.0
    %v95 = vadd.f32 %v77, 1.0
    %v96 = vadd.f32 %v79, 1.0
    %v97 = vadd.f32 %v81, 1.0
    %v98 = vrcp.pop %v82
    %v99 = vmul.f32 %v82, %v98
    %v100 = vsub.f32 1.0, %v99
    %v101 = vmul.f32 %v98, %v100
    %v102 = vadd.f32 %v98, %v101
    %vm103 = vweird.f32 %v82
    %vm104 = vweird.f32 %v98
    %vm105 = vmor %vm103, %vm104
    %v106 = vsel %vm105, %v98, %v102
    %v107 = vand.u32 2147483647, %v82
    %vm108 = vcmp.eq.f32.partialorder %v107, 8.507059e+37
    %v109 = vand.u32 %v82, 2147483648
    %v110 = vor.u32 1.1754944e-38, %v109
    %v111 = vsel %vm108, %v110, %v106
    %v112 = vmul.f32 1.0, %v111
    %v113 = vrcp.pop %v83
    %v114 = vmul.f32 %v83, %v113
    %v115 = vsub.f32 1.0, %v114
    %v116 = vmul.f32 %v113, %v115
    %v117 = vadd.f32 %v113, %v116
    %vm118 = vweird.f32 %v83
    %vm119 = vweird.f32 %v113
    %vm120 = vmor %vm118, %vm119
    %v121 = vsel %vm120, %v113, %v117
    %v122 = vand.u32 2147483647, %v83
    %vm123 = vcmp.eq.f32.partialorder %v122, 8.507059e+37
    %v124 = vand.u32 %v83, 2147483648
    %v125 = vor.u32 1.1754944e-38, %v124
    %v126 = vsel %vm123, %v125, %v121
    %v127 = vmul.f32 1.0, %v126
    %v128 = vrcp.pop %v84
    %v129 = vmul.f32 %v84, %v128
    %v130 = vsub.f32 1.0, %v129
    %v131 = vmul.f32 %v128, %v130
    %v132 = vadd.f32 %v128, %v131
    %vm133 = vweird.f32 %v84
    %vm134 = vweird.f32 %v128
    %vm135 = vmor %vm133, %vm134
    %v136 = vsel %vm135, %v128, %v132
    %v137 = vand.u32 2147483647, %v84
    %vm138 = vcmp.eq.f32.partialorder %v137, 8.507059e+37
    %v139 = vand.u32 %v84, 2147483648
    %v140 = vor.u32 1.1754944e-38, %v139
    %v141 = vsel %vm138, %v140, %v136
    %v142 = vmul.f32 1.0, %v141
    %v143 = vrcp.pop %v85
    %v144 = vmul.f32 %v85, %v143
    %v145 = vsub.f32 1.0, %v144
    %v146 = vmul.f32 %v143, %v145
    %v147 = vadd.f32 %v143, %v146
    %vm148 = vweird.f32 %v85
    %vm149 = vweird.f32 %v143
    %vm150 = vmor %vm148, %vm149
    %v151 = vsel %vm150, %v143, %v147
    %v152 = vand.u32 2147483647, %v85
    %vm153 = vcmp.eq.f32.partialorder %v152, 8.507059e+37
    %v154 = vand.u32 %v85, 2147483648
    %v155 = vor.u32 1.1754944e-38, %v154
    %v156 = vsel %vm153, %v155, %v151
    %v157 = vmul.f32 1.0, %v156
    %v158 = vrcp.pop %v86
    %v159 = vmul.f32 %v86, %v158
    %v160 = vsub.f32 1.0, %v159
    %v161 = vmul.f32 %v158, %v160
    %v162 = vadd.f32 %v158, %v161
    %vm163 = vweird.f32 %v86
    %vm164 = vweird.f32 %v158
    %vm165 = vmor %vm163, %vm164
    %v166 = vsel %vm165, %v158, %v162
    %v167 = vand.u32 2147483647, %v86
    %vm168 = vcmp.eq.f32.partialorder %v167, 8.507059e+37
    %v169 = vand.u32 %v86, 2147483648
    %v170 = vor.u32 1.1754944e-38, %v169
    %v171 = vsel %vm168, %v170, %v166
    %v172 = vmul.f32 1.0, %v171
    %v173 = vrcp.pop %v87
    %v174 = vmul.f32 %v87, %v173
    %v175 = vsub.f32 1.0, %v174
    %v176 = vmul.f32 %v173, %v175
    %v177 = vadd.f32 %v173, %v176
    %vm178 = vweird.f32 %v87
    %vm179 = vweird.f32 %v173
    %vm180 = vmor %vm178, %vm179
    %v181 = vsel %vm180, %v173, %v177
    %v182 = vand.u32 2147483647, %v87
    %vm183 = vcmp.eq.f32.partialorder %v182, 8.507059e+37
    %v184 = vand.u32 %v87, 2147483648
    %v185 = vor.u32 1.1754944e-38, %v184
    %v186 = vsel %vm183, %v185, %v181
    %v187 = vmul.f32 1.0, %v186
    %v188 = vrcp.pop %v88
    %v189 = vmul.f32 %v88, %v188
    %v190 = vsub.f32 1.0, %v189
    %v191 = vmul.f32 %v188, %v190
    %v192 = vadd.f32 %v188, %v191
    %vm193 = vweird.f32 %v88
    %vm194 = vweird.f32 %v188
    %vm195 = vmor %vm193, %vm194
    %v196 = vsel %vm195, %v188, %v192
    %v197 = vand.u32 2147483647, %v88
    %vm198 = vcmp.eq.f32.partialorder %v197, 8.507059e+37
    %v199 = vand.u32 %v88, 2147483648
    %v200 = vor.u32 1.1754944e-38, %v199
    %v201 = vsel %vm198, %v200, %v196
    %v202 = vmul.f32 1.0, %v201
    %v203 = vrcp.pop %v89
    %v204 = vmul.f32 %v89, %v203
    %v205 = vsub.f32 1.0, %v204
    %v206 = vmul.f32 %v203, %v205
    %v207 = vadd.f32 %v203, %v206
    %vm208 = vweird.f32 %v89
    %vm209 = vweird.f32 %v203
    %vm210 = vmor %vm208, %vm209
    %v211 = vsel %vm210, %v203, %v207
    %v212 = vand.u32 2147483647, %v89
    %vm213 = vcmp.eq.f32.partialorder %v212, 8.507059e+37
    %v214 = vand.u32 %v89, 2147483648
    %v215 = vor.u32 1.1754944e-38, %v214
    %v216 = vsel %vm213, %v215, %v211
    %v217 = vmul.f32 1.0, %v216
    %v218 = vrcp.pop %v90
    %v219 = vmul.f32 %v90, %v218
    %v220 = vsub.f32 1.0, %v219
    %v221 = vmul.f32 %v218, %v220
    %v222 = vadd.f32 %v218, %v221
    %vm223 = vweird.f32 %v90
    %vm224 = vweird.f32 %v218
    %vm225 = vmor %vm223, %vm224
    %v226 = vsel %vm225, %v218, %v222
    %v227 = vand.u32 2147483647, %v90
    %vm228 = vcmp.eq.f32.partialorder %v227, 8.507059e+37
    %v229 = vand.u32 %v90, 2147483648
    %v230 = vor.u32 1.1754944e-38, %v229
    %v231 = vsel %vm228, %v230, %v226
    %v232 = vmul.f32 1.0, %v231
    %v233 = vrcp.pop %v91
    %v234 = vmul.f32 %v91, %v233
    %v235 = vsub.f32 1.0, %v234
    %v236 = vmul.f32 %v233, %v235
    %v237 = vadd.f32 %v233, %v236
    %vm238 = vweird.f32 %v91
    %vm239 = vweird.f32 %v233
    %vm240 = vmor %vm238, %vm239
    %v241 = vsel %vm240, %v233, %v237
    %v242 = vand.u32 2147483647, %v91
    %vm243 = vcmp.eq.f32.partialorder %v242, 8.507059e+37
    %v244 = vand.u32 %v91, 2147483648
    %v245 = vor.u32 1.1754944e-38, %v244
    %v246 = vsel %vm243, %v245, %v241
    %v247 = vmul.f32 1.0, %v246
    %v248 = vrcp.pop %v92
    %v249 = vmul.f32 %v92, %v248
    %v250 = vsub.f32 1.0, %v249
    %v251 = vmul.f32 %v248, %v250
    %v252 = vadd.f32 %v248, %v251
    %vm253 = vweird.f32 %v92
    %vm254 = vweird.f32 %v248
    %vm255 = vmor %vm253, %vm254
    %v256 = vsel %vm255, %v248, %v252
    %v257 = vand.u32 2147483647, %v92
    %vm258 = vcmp.eq.f32.partialorder %v257, 8.507059e+37
    %v259 = vand.u32 %v92, 2147483648
    %v260 = vor.u32 1.1754944e-38, %v259
    %v261 = vsel %vm258, %v260, %v256
    %v262 = vmul.f32 1.0, %v261
    %v263 = vrcp.pop %v93
    %v264 = vmul.f32 %v93, %v263
    %v265 = vsub.f32 1.0, %v264
    %v266 = vmul.f32 %v263, %v265
    %v267 = vadd.f32 %v263, %v266
    %vm268 = vweird.f32 %v93
    %vm269 = vweird.f32 %v263
    %vm270 = vmor %vm268, %vm269
    %v271 = vsel %vm270, %v263, %v267
    %v272 = vand.u32 2147483647, %v93
    %vm273 = vcmp.eq.f32.partialorder %v272, 8.507059e+37
    %v274 = vand.u32 %v93, 2147483648
    %v275 = vor.u32 1.1754944e-38, %v274
    %v276 = vsel %vm273, %v275, %v271
    %v277 = vmul.f32 1.0, %v276
    %v278 = vrcp.pop %v94
    %v279 = vmul.f32 %v94, %v278
    %v280 = vsub.f32 1.0, %v279
    %v281 = vmul.f32 %v278, %v280
    %v282 = vadd.f32 %v278, %v281
    %vm283 = vweird.f32 %v94
    %vm284 = vweird.f32 %v278
    %vm285 = vmor %vm283, %vm284
    %v286 = vsel %vm285, %v278, %v282
    %v287 = vand.u32 2147483647, %v94
    %vm288 = vcmp.eq.f32.partialorder %v287, 8.507059e+37
    %v289 = vand.u32 %v94, 2147483648
    %v290 = vor.u32 1.1754944e-38, %v289
    %v291 = vsel %vm288, %v290, %v286
    %v292 = vmul.f32 1.0, %v291
    %v293 = vrcp.pop %v95
    %v294 = vmul.f32 %v95, %v293
    %v295 = vsub.f32 1.0, %v294
    %v296 = vmul.f32 %v293, %v295
    %v297 = vadd.f32 %v293, %v296
    %vm298 = vweird.f32 %v95
    %vm299 = vweird.f32 %v293
    %vm300 = vmor %vm298, %vm299
    %v301 = vsel %vm300, %v293, %v297
    %v302 = vand.u32 2147483647, %v95
    %vm303 = vcmp.eq.f32.partialorder %v302, 8.507059e+37
    %v304 = vand.u32 %v95, 2147483648
    %v305 = vor.u32 1.1754944e-38, %v304
    %v306 = vsel %vm303, %v305, %v301
    %v307 = vmul.f32 1.0, %v306
    %v308 = vrcp.pop %v96
    %v309 = vmul.f32 %v96, %v308
    %v310 = vsub.f32 1.0, %v309
    %v311 = vmul.f32 %v308, %v310
    %v312 = vadd.f32 %v308, %v311
    %vm313 = vweird.f32 %v96
    %vm314 = vweird.f32 %v308
    %vm315 = vmor %vm313, %vm314
    %v316 = vsel %vm315, %v308, %v312
    %v317 = vand.u32 2147483647, %v96
    %vm318 = vcmp.eq.f32.partialorder %v317, 8.507059e+37
    %v319 = vand.u32 %v96, 2147483648
    %v320 = vor.u32 1.1754944e-38, %v319
    %v321 = vsel %vm318, %v320, %v316
    %v322 = vmul.f32 1.0, %v321
    %v323 = vrcp.pop %v97
    %v324 = vmul.f32 %v97, %v323
    %v325 = vsub.f32 1.0, %v324
    %v326 = vmul.f32 %v323, %v325
    %v327 = vadd.f32 %v323, %v326
    %vm328 = vweird.f32 %v97
    %vm329 = vweird.f32 %v323
    %vm330 = vmor %vm328, %vm329
    %v331 = vsel %vm330, %v323, %v327
    %v332 = vand.u32 2147483647, %v97
    %vm333 = vcmp.eq.f32.partialorder %v332, 8.507059e+37
    %v334 = vand.u32 %v97, 2147483648
    %v335 = vor.u32 1.1754944e-38, %v334
    %v336 = vsel %vm333, %v335, %v331
    %v337 = vmul.f32 1.0, %v336
    %v338 = vld [vmem:[%s2] sm:$0xff]
    %v339 = vld [vmem:[%s2 + $0x8] sm:$0xff]
    %v340 = vld [vmem:[%s1] sm:$0xff]
    %v341 = vld [vmem:[%s1 + $0x8] sm:$0xff]
    %v342 = vld [vmem:[%s1 + $0x10] sm:$0xff]
    %v343 = vld [vmem:[%s1 + $0x18] sm:$0xff]
    %v344 = vld [vmem:[%s1 + $0x20] sm:$0xff]
    %v345 = vld [vmem:[%s1 + $0x28] sm:$0xff]
    %v346 = vld [vmem:[%s1 + $0x30] sm:$0xff]
    %v347 = vld [vmem:[%s1 + $0x38] sm:$0xff]
    %v348 = vld [vmem:[%s1 + $0x40] sm:$0xff]
    %v349 = vld [vmem:[%s1 + $0x48] sm:$0xff]
    %v350 = vld [vmem:[%s1 + $0x50] sm:$0xff]
    %v351 = vld [vmem:[%s1 + $0x58] sm:$0xff]
    %v352 = vld [vmem:[%s1 + $0x60] sm:$0xff]
    %v353 = vld [vmem:[%s1 + $0x68] sm:$0xff]
    %v354 = vld [vmem:[%s1 + $0x70] sm:$0xff]
    %v355 = vld [vmem:[%s1 + $0x78] sm:$0xff]
    %v356 = vld [vmem:[%s3] sm:$0xff]
    %v357 = vld [vmem:[%s3 + $0x8] sm:$0xff]
    %359 = vset.pattern.permute.xlu0 0
    %360 = vperm.xlu0 %359, %v340
    %v361 = vpop.permute.xlu0 %360
    %364 = vset.pattern.permute.xlu0 0
    %365 = vperm.xlu0 %364, %v341
    %v366 = vpop.permute.xlu0 %365
    %369 = vset.pattern.permute.xlu0 0
    %370 = vperm.xlu0 %369, %v342
    %v371 = vpop.permute.xlu0 %370
    %374 = vset.pattern.permute.xlu0 0
    %375 = vperm.xlu0 %374, %v343
    %v376 = vpop.permute.xlu0 %375
    %379 = vset.pattern.permute.xlu0 0
    %380 = vperm.xlu0 %379, %v344
    %v381 = vpop.permute.xlu0 %380
    %384 = vset.pattern.permute.xlu0 0
    %385 = vperm.xlu0 %384, %v345
    %v386 = vpop.permute.xlu0 %385
    %389 = vset.pattern.permute.xlu0 0
    %390 = vperm.xlu0 %389, %v346
    %v391 = vpop.permute.xlu0 %390
    %394 = vset.pattern.permute.xlu0 0
    %395 = vperm.xlu0 %394, %v347
    %v396 = vpop.permute.xlu0 %395
    %399 = vset.pattern.permute.xlu0 0
    %400 = vperm.xlu0 %399, %v348
    %v401 = vpop.permute.xlu0 %400
    %404 = vset.pattern.permute.xlu0 0
    %405 = vperm.xlu0 %404, %v349
    %v406 = vpop.permute.xlu0 %405
    %409 = vset.pattern.permute.xlu0 0
    %410 = vperm.xlu0 %409, %v350
    %v411 = vpop.permute.xlu0 %410
    %414 = vset.pattern.permute.xlu0 0
    %415 = vperm.xlu0 %414, %v351
    %v416 = vpop.permute.xlu0 %415
    %419 = vset.pattern.permute.xlu0 0
    %420 = vperm.xlu0 %419, %v352
    %v421 = vpop.permute.xlu0 %420
    %424 = vset.pattern.permute.xlu0 0
    %425 = vperm.xlu0 %424, %v353
    %v426 = vpop.permute.xlu0 %425
    %429 = vset.pattern.permute.xlu0 0
    %430 = vperm.xlu0 %429, %v354
    %v431 = vpop.permute.xlu0 %430
    %434 = vset.pattern.permute.xlu0 0
    %435 = vperm.xlu0 %434, %v355
    %v436 = vpop.permute.xlu0 %435
    %v438 = vperm.slane %v356, 0
    %v439 = vsub.f32 %v361, %v438
    %v440 = vsub.f32 %v366, %v438
    %v441 = vsub.f32 %v371, %v438
    %v442 = vsub.f32 %v376, %v438
    %v443 = vsub.f32 %v381, %v438
    %v444 = vsub.f32 %v386, %v438
    %v445 = vsub.f32 %v391, %v438
    %v446 = vsub.f32 %v396, %v438
    %v447 = vsub.f32 %v401, %v438
    %v448 = vsub.f32 %v406, %v438
    %v449 = vsub.f32 %v411, %v438
    %v450 = vsub.f32 %v416, %v438
    %v451 = vsub.f32 %v421, %v438
    %v452 = vsub.f32 %v426, %v438
    %v453 = vsub.f32 %v431, %v438
    %v454 = vsub.f32 %v436, %v438
    %v455 = vand.u32 2147483647, %v439
    %v456 = vand.u32 2147483647, %v440
    %v457 = vand.u32 2147483647, %v441
    %v458 = vand.u32 2147483647, %v442
    %v459 = vand.u32 2147483647, %v443
    %v460 = vand.u32 2147483647, %v444
    %v461 = vand.u32 2147483647, %v445
    %v462 = vand.u32 2147483647, %v446
    %v463 = vand.u32 2147483647, %v447
    %v464 = vand.u32 2147483647, %v448
    %v465 = vand.u32 2147483647, %v449
    %v466 = vand.u32 2147483647, %v450
    %v467 = vand.u32 2147483647, %v451
    %v468 = vand.u32 2147483647, %v452
    %v469 = vand.u32 2147483647, %v453
    %v470 = vand.u32 2147483647, %v454
    %471 = vset.pattern.permute.xlu0 1
    %472 = vperm.xlu0 %471, %v340
    %v473 = vpop.permute.xlu0 %472
    %475 = vset.pattern.permute.xlu0 1
    %476 = vperm.xlu0 %475, %v341
    %v477 = vpop.permute.xlu0 %476
    %479 = vset.pattern.permute.xlu0 1
    %480 = vperm.xlu0 %479, %v342
    %v481 = vpop.permute.xlu0 %480
    %483 = vset.pattern.permute.xlu0 1
    %484 = vperm.xlu0 %483, %v343
    %v485 = vpop.permute.xlu0 %484
    %487 = vset.pattern.permute.xlu0 1
    %488 = vperm.xlu0 %487, %v344
    %v489 = vpop.permute.xlu0 %488
    %491 = vset.pattern.permute.xlu0 1
    %492 = vperm.xlu0 %491, %v345
    %v493 = vpop.permute.xlu0 %492
    %495 = vset.pattern.permute.xlu0 1
    %496 = vperm.xlu0 %495, %v346
    %v497 = vpop.permute.xlu0 %496
    %499 = vset.pattern.permute.xlu0 1
    %500 = vperm.xlu0 %499, %v347
    %v501 = vpop.permute.xlu0 %500
    %503 = vset.pattern.permute.xlu0 1
    %504 = vperm.xlu0 %503, %v348
    %v505 = vpop.permute.xlu0 %504
    %507 = vset.pattern.permute.xlu0 1
    %508 = vperm.xlu0 %507, %v349
    %v509 = vpop.permute.xlu0 %508
    %511 = vset.pattern.permute.xlu0 1
    %512 = vperm.xlu0 %511, %v350
    %v513 = vpop.permute.xlu0 %512
    %515 = vset.pattern.permute.xlu0 1
    %516 = vperm.xlu0 %515, %v351
    %v517 = vpop.permute.xlu0 %516
    %519 = vset.pattern.permute.xlu0 1
    %520 = vperm.xlu0 %519, %v352
    %v521 = vpop.permute.xlu0 %520
    %523 = vset.pattern.permute.xlu0 1
    %524 = vperm.xlu0 %523, %v353
    %v525 = vpop.permute.xlu0 %524
    %527 = vset.pattern.permute.xlu0 1
    %528 = vperm.xlu0 %527, %v354
    %v529 = vpop.permute.xlu0 %528
    %531 = vset.pattern.permute.xlu0 1
    %532 = vperm.xlu0 %531, %v355
    %v533 = vpop.permute.xlu0 %532
    %v535 = vperm.slane %v356, 1
    %v536 = vsub.f32 %v473, %v535
    %v537 = vsub.f32 %v477, %v535
    %v538 = vsub.f32 %v481, %v535
    %v539 = vsub.f32 %v485, %v535
    %v540 = vsub.f32 %v489, %v535
    %v541 = vsub.f32 %v493, %v535
    %v542 = vsub.f32 %v497, %v535
    %v543 = vsub.f32 %v501, %v535
    %v544 = vsub.f32 %v505, %v535
    %v545 = vsub.f32 %v509, %v535
    %v546 = vsub.f32 %v513, %v535
    %v547 = vsub.f32 %v517, %v535
    %v548 = vsub.f32 %v521, %v535
    %v549 = vsub.f32 %v525, %v535
    %v550 = vsub.f32 %v529, %v535
    %v551 = vsub.f32 %v533, %v535
    %v552 = vand.u32 2147483647, %v536
    %v553 = vand.u32 2147483647, %v537
    %v554 = vand.u32 2147483647, %v538
    %v555 = vand.u32 2147483647, %v539
    %v556 = vand.u32 2147483647, %v540
    %v557 = vand.u32 2147483647, %v541
    %v558 = vand.u32 2147483647, %v542
    %v559 = vand.u32 2147483647, %v543
    %v560 = vand.u32 2147483647, %v544
    %v561 = vand.u32 2147483647, %v545
    %v562 = vand.u32 2147483647, %v546
    %v563 = vand.u32 2147483647, %v547
    %v564 = vand.u32 2147483647, %v548
    %v565 = vand.u32 2147483647, %v549
    %v566 = vand.u32 2147483647, %v550
    %v567 = vand.u32 2147483647, %v551
    %v568 = vadd.f32 %v455, %v552
    %v569 = vadd.f32 %v456, %v553
    %v570 = vadd.f32 %v457, %v554
    %v571 = vadd.f32 %v458, %v555
    %v572 = vadd.f32 %v459, %v556
    %v573 = vadd.f32 %v460, %v557
    %v574 = vadd.f32 %v461, %v558
    %v575 = vadd.f32 %v462, %v559
    %v576 = vadd.f32 %v463, %v560
    %v577 = vadd.f32 %v464, %v561
    %v578 = vadd.f32 %v465, %v562
    %v579 = vadd.f32 %v466, %v563
    %v580 = vadd.f32 %v467, %v564
    %v581 = vadd.f32 %v468, %v565
    %v582 = vadd.f32 %v469, %v566
    %v583 = vadd.f32 %v470, %v567
    %584 = vset.pattern.permute.xlu0 2
    %585 = vperm.xlu0 %584, %v340
    %v586 = vpop.permute.xlu0 %585
    %588 = vset.pattern.permute.xlu0 2
    %589 = vperm.xlu0 %588, %v341
    %v590 = vpop.permute.xlu0 %589
    %592 = vset.pattern.permute.xlu0 2
    %593 = vperm.xlu0 %592, %v342
    %v594 = vpop.permute.xlu0 %593
    %596 = vset.pattern.permute.xlu0 2
    %597 = vperm.xlu0 %596, %v343
    %v598 = vpop.permute.xlu0 %597
    %600 = vset.pattern.permute.xlu0 2
    %601 = vperm.xlu0 %600, %v344
    %v602 = vpop.permute.xlu0 %601
    %604 = vset.pattern.permute.xlu0 2
    %605 = vperm.xlu0 %604, %v345
    %v606 = vpop.permute.xlu0 %605
    %608 = vset.pattern.permute.xlu0 2
    %609 = vperm.xlu0 %608, %v346
    %v610 = vpop.permute.xlu0 %609
    %612 = vset.pattern.permute.xlu0 2
    %613 = vperm.xlu0 %612, %v347
    %v614 = vpop.permute.xlu0 %613
    %616 = vset.pattern.permute.xlu0 2
    %617 = vperm.xlu0 %616, %v348
    %v618 = vpop.permute.xlu0 %617
    %620 = vset.pattern.permute.xlu0 2
    %621 = vperm.xlu0 %620, %v349
    %v622 = vpop.permute.xlu0 %621
    %624 = vset.pattern.permute.xlu0 2
    %625 = vperm.xlu0 %624, %v350
    %v626 = vpop.permute.xlu0 %625
    %628 = vset.pattern.permute.xlu0 2
    %629 = vperm.xlu0 %628, %v351
    %v630 = vpop.permute.xlu0 %629
    %632 = vset.pattern.permute.xlu0 2
    %633 = vperm.xlu0 %632, %v352
    %v634 = vpop.permute.xlu0 %633
    %636 = vset.pattern.permute.xlu0 2
    %637 = vperm.xlu0 %636, %v353
    %v638 = vpop.permute.xlu0 %637
    %640 = vset.pattern.permute.xlu0 2
    %641 = vperm.xlu0 %640, %v354
    %v642 = vpop.permute.xlu0 %641
    %644 = vset.pattern.permute.xlu0 2
    %645 = vperm.xlu0 %644, %v355
    %v646 = vpop.permute.xlu0 %645
    %v648 = vperm.slane %v356, 2
    %v649 = vsub.f32 %v586, %v648
    %v650 = vsub.f32 %v590, %v648
    %v651 = vsub.f32 %v594, %v648
    %v652 = vsub.f32 %v598, %v648
    %v653 = vsub.f32 %v602, %v648
    %v654 = vsub.f32 %v606, %v648
    %v655 = vsub.f32 %v610, %v648
    %v656 = vsub.f32 %v614, %v648
    %v657 = vsub.f32 %v618, %v648
    %v658 = vsub.f32 %v622, %v648
    %v659 = vsub.f32 %v626, %v648
    %v660 = vsub.f32 %v630, %v648
    %v661 = vsub.f32 %v634, %v648
    %v662 = vsub.f32 %v638, %v648
    %v663 = vsub.f32 %v642, %v648
    %v664 = vsub.f32 %v646, %v648
    %v665 = vand.u32 2147483647, %v649
    %v666 = vand.u32 2147483647, %v650
    %v667 = vand.u32 2147483647, %v651
    %v668 = vand.u32 2147483647, %v652
    %v669 = vand.u32 2147483647, %v653
    %v670 = vand.u32 2147483647, %v654
    %v671 = vand.u32 2147483647, %v655
    %v672 = vand.u32 2147483647, %v656
    %v673 = vand.u32 2147483647, %v657
    %v674 = vand.u32 2147483647, %v658
    %v675 = vand.u32 2147483647, %v659
    %v676 = vand.u32 2147483647, %v660
    %v677 = vand.u32 2147483647, %v661
    %v678 = vand.u32 2147483647, %v662
    %v679 = vand.u32 2147483647, %v663
    %v680 = vand.u32 2147483647, %v664
    %v681 = vadd.f32 %v568, %v665
    %v682 = vadd.f32 %v569, %v666
    %v683 = vadd.f32 %v570, %v667
    %v684 = vadd.f32 %v571, %v668
    %v685 = vadd.f32 %v572, %v669
    %v686 = vadd.f32 %v573, %v670
    %v687 = vadd.f32 %v574, %v671
    %v688 = vadd.f32 %v575, %v672
    %v689 = vadd.f32 %v576, %v673
    %v690 = vadd.f32 %v577, %v674
    %v691 = vadd.f32 %v578, %v675
    %v692 = vadd.f32 %v579, %v676
    %v693 = vadd.f32 %v580, %v677
    %v694 = vadd.f32 %v581, %v678
    %v695 = vadd.f32 %v582, %v679
    %v696 = vadd.f32 %v583, %v680
    %697 = vset.pattern.permute.xlu0 3
    %698 = vperm.xlu0 %697, %v340
    %v699 = vpop.permute.xlu0 %698
    %701 = vset.pattern.permute.xlu0 3
    %702 = vperm.xlu0 %701, %v341
    %v703 = vpop.permute.xlu0 %702
    %705 = vset.pattern.permute.xlu0 3
    %706 = vperm.xlu0 %705, %v342
    %v707 = vpop.permute.xlu0 %706
    %709 = vset.pattern.permute.xlu0 3
    %710 = vperm.xlu0 %709, %v343
    %v711 = vpop.permute.xlu0 %710
    %713 = vset.pattern.permute.xlu0 3
    %714 = vperm.xlu0 %713, %v344
    %v715 = vpop.permute.xlu0 %714
    %717 = vset.pattern.permute.xlu0 3
    %718 = vperm.xlu0 %717, %v345
    %v719 = vpop.permute.xlu0 %718
    %721 = vset.pattern.permute.xlu0 3
    %722 = vperm.xlu0 %721, %v346
    %v723 = vpop.permute.xlu0 %722
    %725 = vset.pattern.permute.xlu0 3
    %726 = vperm.xlu0 %725, %v347
    %v727 = vpop.permute.xlu0 %726
    %729 = vset.pattern.permute.xlu0 3
    %730 = vperm.xlu0 %729, %v348
    %v731 = vpop.permute.xlu0 %730
    %733 = vset.pattern.permute.xlu0 3
    %734 = vperm.xlu0 %733, %v349
    %v735 = vpop.permute.xlu0 %734
    %737 = vset.pattern.permute.xlu0 3
    %738 = vperm.xlu0 %737, %v350
    %v739 = vpop.permute.xlu0 %738
    %741 = vset.pattern.permute.xlu0 3
    %742 = vperm.xlu0 %741, %v351
    %v743 = vpop.permute.xlu0 %742
    %745 = vset.pattern.permute.xlu0 3
    %746 = vperm.xlu0 %745, %v352
    %v747 = vpop.permute.xlu0 %746
    %749 = vset.pattern.permute.xlu0 3
    %750 = vperm.xlu0 %749, %v353
    %v751 = vpop.permute.xlu0 %750
    %753 = vset.pattern.permute.xlu0 3
    %754 = vperm.xlu0 %753, %v354
    %v755 = vpop.permute.xlu0 %754
    %757 = vset.pattern.permute.xlu0 3
    %758 = vperm.xlu0 %757, %v355
    %v759 = vpop.permute.xlu0 %758
    %v761 = vperm.slane %v356, 3
    %v762 = vsub.f32 %v699, %v761
    %v763 = vsub.f32 %v703, %v761
    %v764 = vsub.f32 %v707, %v761
    %v765 = vsub.f32 %v711, %v761
    %v766 = vsub.f32 %v715, %v761
    %v767 = vsub.f32 %v719, %v761
    %v768 = vsub.f32 %v723, %v761
    %v769 = vsub.f32 %v727, %v761
    %v770 = vsub.f32 %v731, %v761
    %v771 = vsub.f32 %v735, %v761
    %v772 = vsub.f32 %v739, %v761
    %v773 = vsub.f32 %v743, %v761
    %v774 = vsub.f32 %v747, %v761
    %v775 = vsub.f32 %v751, %v761
    %v776 = vsub.f32 %v755, %v761
    %v777 = vsub.f32 %v759, %v761
    %v778 = vand.u32 2147483647, %v762
    %v779 = vand.u32 2147483647, %v763
    %v780 = vand.u32 2147483647, %v764
    %v781 = vand.u32 2147483647, %v765
    %v782 = vand.u32 2147483647, %v766
    %v783 = vand.u32 2147483647, %v767
    %v784 = vand.u32 2147483647, %v768
    %v785 = vand.u32 2147483647, %v769
    %v786 = vand.u32 2147483647, %v770
    %v787 = vand.u32 2147483647, %v771
    %v788 = vand.u32 2147483647, %v772
    %v789 = vand.u32 2147483647, %v773
    %v790 = vand.u32 2147483647, %v774
    %v791 = vand.u32 2147483647, %v775
    %v792 = vand.u32 2147483647, %v776
    %v793 = vand.u32 2147483647, %v777
    %v794 = vadd.f32 %v681, %v778
    %v795 = vadd.f32 %v682, %v779
    %v796 = vadd.f32 %v683, %v780
    %v797 = vadd.f32 %v684, %v781
    %v798 = vadd.f32 %v685, %v782
    %v799 = vadd.f32 %v686, %v783
    %v800 = vadd.f32 %v687, %v784
    %v801 = vadd.f32 %v688, %v785
    %v802 = vadd.f32 %v689, %v786
    %v803 = vadd.f32 %v690, %v787
    %v804 = vadd.f32 %v691, %v788
    %v805 = vadd.f32 %v692, %v789
    %v806 = vadd.f32 %v693, %v790
    %v807 = vadd.f32 %v694, %v791
    %v808 = vadd.f32 %v695, %v792
    %v809 = vadd.f32 %v696, %v793
    %810 = vset.pattern.permute.xlu0 6
    %811 = vperm.xlu0 %810, %v340
    %v812 = vpop.permute.xlu0 %811
    %814 = vset.pattern.permute.xlu0 6
    %815 = vperm.xlu0 %814, %v341
    %v816 = vpop.permute.xlu0 %815
    %818 = vset.pattern.permute.xlu0 6
    %819 = vperm.xlu0 %818, %v342
    %v820 = vpop.permute.xlu0 %819
    %822 = vset.pattern.permute.xlu0 6
    %823 = vperm.xlu0 %822, %v343
    %v824 = vpop.permute.xlu0 %823
    %826 = vset.pattern.permute.xlu0 6
    %827 = vperm.xlu0 %826, %v344
    %v828 = vpop.permute.xlu0 %827
    %830 = vset.pattern.permute.xlu0 6
    %831 = vperm.xlu0 %830, %v345
    %v832 = vpop.permute.xlu0 %831
    %834 = vset.pattern.permute.xlu0 6
    %835 = vperm.xlu0 %834, %v346
    %v836 = vpop.permute.xlu0 %835
    %838 = vset.pattern.permute.xlu0 6
    %839 = vperm.xlu0 %838, %v347
    %v840 = vpop.permute.xlu0 %839
    %842 = vset.pattern.permute.xlu0 6
    %843 = vperm.xlu0 %842, %v348
    %v844 = vpop.permute.xlu0 %843
    %846 = vset.pattern.permute.xlu0 6
    %847 = vperm.xlu0 %846, %v349
    %v848 = vpop.permute.xlu0 %847
    %850 = vset.pattern.permute.xlu0 6
    %851 = vperm.xlu0 %850, %v350
    %v852 = vpop.permute.xlu0 %851
    %854 = vset.pattern.permute.xlu0 6
    %855 = vperm.xlu0 %854, %v351
    %v856 = vpop.permute.xlu0 %855
    %858 = vset.pattern.permute.xlu0 6
    %859 = vperm.xlu0 %858, %v352
    %v860 = vpop.permute.xlu0 %859
    %862 = vset.pattern.permute.xlu0 6
    %863 = vperm.xlu0 %862, %v353
    %v864 = vpop.permute.xlu0 %863
    %866 = vset.pattern.permute.xlu0 6
    %867 = vperm.xlu0 %866, %v354
    %v868 = vpop.permute.xlu0 %867
    %870 = vset.pattern.permute.xlu0 6
    %871 = vperm.xlu0 %870, %v355
    %v872 = vpop.permute.xlu0 %871
    %v874 = vperm.slane %v356, 6
    %v875 = vmin.f32 %v812, %v874
    %v876 = vmin.f32 %v816, %v874
    %v877 = vmin.f32 %v820, %v874
    %v878 = vmin.f32 %v824, %v874
    %v879 = vmin.f32 %v828, %v874
    %v880 = vmin.f32 %v832, %v874
    %v881 = vmin.f32 %v836, %v874
    %v882 = vmin.f32 %v840, %v874
    %v883 = vmin.f32 %v844, %v874
    %v884 = vmin.f32 %v848, %v874
    %v885 = vmin.f32 %v852, %v874
    %v886 = vmin.f32 %v856, %v874
    %v887 = vmin.f32 %v860, %v874
    %v888 = vmin.f32 %v864, %v874
    %v889 = vmin.f32 %v868, %v874
    %v890 = vmin.f32 %v872, %v874
    %891 = vset.pattern.permute.xlu0 4
    %892 = vperm.xlu0 %891, %v340
    %v893 = vpop.permute.xlu0 %892
    %895 = vset.pattern.permute.xlu0 4
    %896 = vperm.xlu0 %895, %v341
    %v897 = vpop.permute.xlu0 %896
    %899 = vset.pattern.permute.xlu0 4
    %900 = vperm.xlu0 %899, %v342
    %v901 = vpop.permute.xlu0 %900
    %903 = vset.pattern.permute.xlu0 4
    %904 = vperm.xlu0 %903, %v343
    %v905 = vpop.permute.xlu0 %904
    %907 = vset.pattern.permute.xlu0 4
    %908 = vperm.xlu0 %907, %v344
    %v909 = vpop.permute.xlu0 %908
    %911 = vset.pattern.permute.xlu0 4
    %912 = vperm.xlu0 %911, %v345
    %v913 = vpop.permute.xlu0 %912
    %915 = vset.pattern.permute.xlu0 4
    %916 = vperm.xlu0 %915, %v346
    %v917 = vpop.permute.xlu0 %916
    %919 = vset.pattern.permute.xlu0 4
    %920 = vperm.xlu0 %919, %v347
    %v921 = vpop.permute.xlu0 %920
    %923 = vset.pattern.permute.xlu0 4
    %924 = vperm.xlu0 %923, %v348
    %v925 = vpop.permute.xlu0 %924
    %927 = vset.pattern.permute.xlu0 4
    %928 = vperm.xlu0 %927, %v349
    %v929 = vpop.permute.xlu0 %928
    %931 = vset.pattern.permute.xlu0 4
    %932 = vperm.xlu0 %931, %v350
    %v933 = vpop.permute.xlu0 %932
    %935 = vset.pattern.permute.xlu0 4
    %936 = vperm.xlu0 %935, %v351
    %v937 = vpop.permute.xlu0 %936
    %939 = vset.pattern.permute.xlu0 4
    %940 = vperm.xlu0 %939, %v352
    %v941 = vpop.permute.xlu0 %940
    %943 = vset.pattern.permute.xlu0 4
    %944 = vperm.xlu0 %943, %v353
    %v945 = vpop.permute.xlu0 %944
    %947 = vset.pattern.permute.xlu0 4
    %948 = vperm.xlu0 %947, %v354
    %v949 = vpop.permute.xlu0 %948
    %951 = vset.pattern.permute.xlu0 4
    %952 = vperm.xlu0 %951, %v355
    %v953 = vpop.permute.xlu0 %952
    %v955 = vperm.slane %v356, 4
    %v956 = vmax.f32 %v893, %v955
    %v957 = vmax.f32 %v897, %v955
    %v958 = vmax.f32 %v901, %v955
    %v959 = vmax.f32 %v905, %v955
    %v960 = vmax.f32 %v909, %v955
    %v961 = vmax.f32 %v913, %v955
    %v962 = vmax.f32 %v917, %v955
    %v963 = vmax.f32 %v921, %v955
    %v964 = vmax.f32 %v925, %v955
    %v965 = vmax.f32 %v929, %v955
    %v966 = vmax.f32 %v933, %v955
    %v967 = vmax.f32 %v937, %v955
    %v968 = vmax.f32 %v941, %v955
    %v969 = vmax.f32 %v945, %v955
    %v970 = vmax.f32 %v949, %v955
    %v971 = vmax.f32 %v953, %v955
    %v972 = vsub.f32 %v875, %v956
    %v973 = vsub.f32 %v876, %v957
    %v974 = vsub.f32 %v877, %v958
    %v975 = vsub.f32 %v878, %v959
    %v976 = vsub.f32 %v879, %v960
    %v977 = vsub.f32 %v880, %v961
    %v978 = vsub.f32 %v881, %v962
    %v979 = vsub.f32 %v882, %v963
    %v980 = vsub.f32 %v883, %v964
    %v981 = vsub.f32 %v884, %v965
    %v982 = vsub.f32 %v885, %v966
    %v983 = vsub.f32 %v886, %v967
    %v984 = vsub.f32 %v887, %v968
    %v985 = vsub.f32 %v888, %v969
    %v986 = vsub.f32 %v889, %v970
    %v987 = vsub.f32 %v890, %v971
    %v988 = vmax.f32 %v972, 0.0
    %v989 = vmax.f32 %v973, 0.0
    %v990 = vmax.f32 %v974, 0.0
    %v991 = vmax.f32 %v975, 0.0
    %v992 = vmax.f32 %v976, 0.0
    %v993 = vmax.f32 %v977, 0.0
    %v994 = vmax.f32 %v978, 0.0
    %v995 = vmax.f32 %v979, 0.0
    %v996 = vmax.f32 %v980, 0.0
    %v997 = vmax.f32 %v981, 0.0
    %v998 = vmax.f32 %v982, 0.0
    %v999 = vmax.f32 %v983, 0.0
    %v1000 = vmax.f32 %v984, 0.0
    %v1001 = vmax.f32 %v985, 0.0
    %v1002 = vmax.f32 %v986, 0.0
    %v1003 = vmax.f32 %v987, 0.0
    %1004 = vset.pattern.permute.xlu0 7
    %1005 = vperm.xlu0 %1004, %v340
    %v1006 = vpop.permute.xlu0 %1005
    %1008 = vset.pattern.permute.xlu0 7
    %1009 = vperm.xlu0 %1008, %v341
    %v1010 = vpop.permute.xlu0 %1009
    %1012 = vset.pattern.permute.xlu0 7
    %1013 = vperm.xlu0 %1012, %v342
    %v1014 = vpop.permute.xlu0 %1013
    %1016 = vset.pattern.permute.xlu0 7
    %1017 = vperm.xlu0 %1016, %v343
    %v1018 = vpop.permute.xlu0 %1017
    %1020 = vset.pattern.permute.xlu0 7
    %1021 = vperm.xlu0 %1020, %v344
    %v1022 = vpop.permute.xlu0 %1021
    %1024 = vset.pattern.permute.xlu0 7
    %1025 = vperm.xlu0 %1024, %v345
    %v1026 = vpop.permute.xlu0 %1025
    %1028 = vset.pattern.permute.xlu0 7
    %1029 = vperm.xlu0 %1028, %v346
    %v1030 = vpop.permute.xlu0 %1029
    %1032 = vset.pattern.permute.xlu0 7
    %1033 = vperm.xlu0 %1032, %v347
    %v1034 = vpop.permute.xlu0 %1033
    %1036 = vset.pattern.permute.xlu0 7
    %1037 = vperm.xlu0 %1036, %v348
    %v1038 = vpop.permute.xlu0 %1037
    %1040 = vset.pattern.permute.xlu0 7
    %1041 = vperm.xlu0 %1040, %v349
    %v1042 = vpop.permute.xlu0 %1041
    %1044 = vset.pattern.permute.xlu0 7
    %1045 = vperm.xlu0 %1044, %v350
    %v1046 = vpop.permute.xlu0 %1045
    %1048 = vset.pattern.permute.xlu0 7
    %1049 = vperm.xlu0 %1048, %v351
    %v1050 = vpop.permute.xlu0 %1049
    %1052 = vset.pattern.permute.xlu0 7
    %1053 = vperm.xlu0 %1052, %v352
    %v1054 = vpop.permute.xlu0 %1053
    %1056 = vset.pattern.permute.xlu0 7
    %1057 = vperm.xlu0 %1056, %v353
    %v1058 = vpop.permute.xlu0 %1057
    %1060 = vset.pattern.permute.xlu0 7
    %1061 = vperm.xlu0 %1060, %v354
    %v1062 = vpop.permute.xlu0 %1061
    %1064 = vset.pattern.permute.xlu0 7
    %1065 = vperm.xlu0 %1064, %v355
    %v1066 = vpop.permute.xlu0 %1065
    %v1068 = vperm.slane %v356, 7
    %v1069 = vmin.f32 %v1006, %v1068
    %v1070 = vmin.f32 %v1010, %v1068
    %v1071 = vmin.f32 %v1014, %v1068
    %v1072 = vmin.f32 %v1018, %v1068
    %v1073 = vmin.f32 %v1022, %v1068
    %v1074 = vmin.f32 %v1026, %v1068
    %v1075 = vmin.f32 %v1030, %v1068
    %v1076 = vmin.f32 %v1034, %v1068
    %v1077 = vmin.f32 %v1038, %v1068
    %v1078 = vmin.f32 %v1042, %v1068
    %v1079 = vmin.f32 %v1046, %v1068
    %v1080 = vmin.f32 %v1050, %v1068
    %v1081 = vmin.f32 %v1054, %v1068
    %v1082 = vmin.f32 %v1058, %v1068
    %v1083 = vmin.f32 %v1062, %v1068
    %v1084 = vmin.f32 %v1066, %v1068
    %1085 = vset.pattern.permute.xlu0 5
    %1086 = vperm.xlu0 %1085, %v340
    %v1087 = vpop.permute.xlu0 %1086
    %1089 = vset.pattern.permute.xlu0 5
    %1090 = vperm.xlu0 %1089, %v341
    %v1091 = vpop.permute.xlu0 %1090
    %1093 = vset.pattern.permute.xlu0 5
    %1094 = vperm.xlu0 %1093, %v342
    %v1095 = vpop.permute.xlu0 %1094
    %1097 = vset.pattern.permute.xlu0 5
    %1098 = vperm.xlu0 %1097, %v343
    %v1099 = vpop.permute.xlu0 %1098
    %1101 = vset.pattern.permute.xlu0 5
    %1102 = vperm.xlu0 %1101, %v344
    %v1103 = vpop.permute.xlu0 %1102
    %1105 = vset.pattern.permute.xlu0 5
    %1106 = vperm.xlu0 %1105, %v345
    %v1107 = vpop.permute.xlu0 %1106
    %1109 = vset.pattern.permute.xlu0 5
    %1110 = vperm.xlu0 %1109, %v346
    %v1111 = vpop.permute.xlu0 %1110
    %1113 = vset.pattern.permute.xlu0 5
    %1114 = vperm.xlu0 %1113, %v347
    %v1115 = vpop.permute.xlu0 %1114
    %1117 = vset.pattern.permute.xlu0 5
    %1118 = vperm.xlu0 %1117, %v348
    %v1119 = vpop.permute.xlu0 %1118
    %1121 = vset.pattern.permute.xlu0 5
    %1122 = vperm.xlu0 %1121, %v349
    %v1123 = vpop.permute.xlu0 %1122
    %1125 = vset.pattern.permute.xlu0 5
    %1126 = vperm.xlu0 %1125, %v350
    %v1127 = vpop.permute.xlu0 %1126
    %1129 = vset.pattern.permute.xlu0 5
    %1130 = vperm.xlu0 %1129, %v351
    %v1131 = vpop.permute.xlu0 %1130
    %1133 = vset.pattern.permute.xlu0 5
    %1134 = vperm.xlu0 %1133, %v352
    %v1135 = vpop.permute.xlu0 %1134
    %1137 = vset.pattern.permute.xlu0 5
    %1138 = vperm.xlu0 %1137, %v353
    %v1139 = vpop.permute.xlu0 %1138
    %1141 = vset.pattern.permute.xlu0 5
    %1142 = vperm.xlu0 %1141, %v354
    %v1143 = vpop.permute.xlu0 %1142
    %1145 = vset.pattern.permute.xlu0 5
    %1146 = vperm.xlu0 %1145, %v355
    %v1147 = vpop.permute.xlu0 %1146
    %v1149 = vperm.slane %v356, 5
    %v1150 = vmax.f32 %v1087, %v1149
    %v1151 = vmax.f32 %v1091, %v1149
    %v1152 = vmax.f32 %v1095, %v1149
    %v1153 = vmax.f32 %v1099, %v1149
    %v1154 = vmax.f32 %v1103, %v1149
    %v1155 = vmax.f32 %v1107, %v1149
    %v1156 = vmax.f32 %v1111, %v1149
    %v1157 = vmax.f32 %v1115, %v1149
    %v1158 = vmax.f32 %v1119, %v1149
    %v1159 = vmax.f32 %v1123, %v1149
    %v1160 = vmax.f32 %v1127, %v1149
    %v1161 = vmax.f32 %v1131, %v1149
    %v1162 = vmax.f32 %v1135, %v1149
    %v1163 = vmax.f32 %v1139, %v1149
    %v1164 = vmax.f32 %v1143, %v1149
    %v1165 = vmax.f32 %v1147, %v1149
    %v1166 = vsub.f32 %v1069, %v1150
    %v1167 = vsub.f32 %v1070, %v1151
    %v1168 = vsub.f32 %v1071, %v1152
    %v1169 = vsub.f32 %v1072, %v1153
    %v1170 = vsub.f32 %v1073, %v1154
    %v1171 = vsub.f32 %v1074, %v1155
    %v1172 = vsub.f32 %v1075, %v1156
    %v1173 = vsub.f32 %v1076, %v1157
    %v1174 = vsub.f32 %v1077, %v1158
    %v1175 = vsub.f32 %v1078, %v1159
    %v1176 = vsub.f32 %v1079, %v1160
    %v1177 = vsub.f32 %v1080, %v1161
    %v1178 = vsub.f32 %v1081, %v1162
    %v1179 = vsub.f32 %v1082, %v1163
    %v1180 = vsub.f32 %v1083, %v1164
    %v1181 = vsub.f32 %v1084, %v1165
    %v1182 = vmax.f32 %v1166, 0.0
    %v1183 = vmax.f32 %v1167, 0.0
    %v1184 = vmax.f32 %v1168, 0.0
    %v1185 = vmax.f32 %v1169, 0.0
    %v1186 = vmax.f32 %v1170, 0.0
    %v1187 = vmax.f32 %v1171, 0.0
    %v1188 = vmax.f32 %v1172, 0.0
    %v1189 = vmax.f32 %v1173, 0.0
    %v1190 = vmax.f32 %v1174, 0.0
    %v1191 = vmax.f32 %v1175, 0.0
    %v1192 = vmax.f32 %v1176, 0.0
    %v1193 = vmax.f32 %v1177, 0.0
    %v1194 = vmax.f32 %v1178, 0.0
    %v1195 = vmax.f32 %v1179, 0.0
    %v1196 = vmax.f32 %v1180, 0.0
    %v1197 = vmax.f32 %v1181, 0.0
    %v1198 = vmul.f32 %v988, %v1182
    %v1199 = vmul.f32 %v989, %v1183
    %v1200 = vmul.f32 %v990, %v1184
    %v1201 = vmul.f32 %v991, %v1185
    %v1202 = vmul.f32 %v992, %v1186
    %v1203 = vmul.f32 %v993, %v1187
    %v1204 = vmul.f32 %v994, %v1188
    %v1205 = vmul.f32 %v995, %v1189
    %v1206 = vmul.f32 %v996, %v1190
    %v1207 = vmul.f32 %v997, %v1191
    %v1208 = vmul.f32 %v998, %v1192
    %v1209 = vmul.f32 %v999, %v1193
    %v1210 = vmul.f32 %v1000, %v1194
    %v1211 = vmul.f32 %v1001, %v1195
    %v1212 = vmul.f32 %v1002, %v1196
    %v1213 = vmul.f32 %v1003, %v1197
    %1214 = vset.pattern.permute.xlu0 8
    %1215 = vperm.xlu0 %1214, %v340
    %v1216 = vpop.permute.xlu0 %1215
    %1218 = vset.pattern.permute.xlu0 8
    %1219 = vperm.xlu0 %1218, %v341
    %v1220 = vpop.permute.xlu0 %1219
    %1222 = vset.pattern.permute.xlu0 8
    %1223 = vperm.xlu0 %1222, %v342
    %v1224 = vpop.permute.xlu0 %1223
    %1226 = vset.pattern.permute.xlu0 8
    %1227 = vperm.xlu0 %1226, %v343
    %v1228 = vpop.permute.xlu0 %1227
    %1230 = vset.pattern.permute.xlu0 8
    %1231 = vperm.xlu0 %1230, %v344
    %v1232 = vpop.permute.xlu0 %1231
    %1234 = vset.pattern.permute.xlu0 8
    %1235 = vperm.xlu0 %1234, %v345
    %v1236 = vpop.permute.xlu0 %1235
    %1238 = vset.pattern.permute.xlu0 8
    %1239 = vperm.xlu0 %1238, %v346
    %v1240 = vpop.permute.xlu0 %1239
    %1242 = vset.pattern.permute.xlu0 8
    %1243 = vperm.xlu0 %1242, %v347
    %v1244 = vpop.permute.xlu0 %1243
    %1246 = vset.pattern.permute.xlu0 8
    %1247 = vperm.xlu0 %1246, %v348
    %v1248 = vpop.permute.xlu0 %1247
    %1250 = vset.pattern.permute.xlu0 8
    %1251 = vperm.xlu0 %1250, %v349
    %v1252 = vpop.permute.xlu0 %1251
    %1254 = vset.pattern.permute.xlu0 8
    %1255 = vperm.xlu0 %1254, %v350
    %v1256 = vpop.permute.xlu0 %1255
    %1258 = vset.pattern.permute.xlu0 8
    %1259 = vperm.xlu0 %1258, %v351
    %v1260 = vpop.permute.xlu0 %1259
    %1262 = vset.pattern.permute.xlu0 8
    %1263 = vperm.xlu0 %1262, %v352
    %v1264 = vpop.permute.xlu0 %1263
    %1266 = vset.pattern.permute.xlu0 8
    %1267 = vperm.xlu0 %1266, %v353
    %v1268 = vpop.permute.xlu0 %1267
    %1270 = vset.pattern.permute.xlu0 8
    %1271 = vperm.xlu0 %1270, %v354
    %v1272 = vpop.permute.xlu0 %1271
    %1274 = vset.pattern.permute.xlu0 8
    %1275 = vperm.xlu0 %1274, %v355
    %v1276 = vpop.permute.xlu0 %1275
    %v1278 = vperm.slane %v357, 0
    %v1279 = vadd.f32 %v1216, %v1278
    %v1280 = vadd.f32 %v1220, %v1278
    %v1281 = vadd.f32 %v1224, %v1278
    %v1282 = vadd.f32 %v1228, %v1278
    %v1283 = vadd.f32 %v1232, %v1278
    %v1284 = vadd.f32 %v1236, %v1278
    %v1285 = vadd.f32 %v1240, %v1278
    %v1286 = vadd.f32 %v1244, %v1278
    %v1287 = vadd.f32 %v1248, %v1278
    %v1288 = vadd.f32 %v1252, %v1278
    %v1289 = vadd.f32 %v1256, %v1278
    %v1290 = vadd.f32 %v1260, %v1278
    %v1291 = vadd.f32 %v1264, %v1278
    %v1292 = vadd.f32 %v1268, %v1278
    %v1293 = vadd.f32 %v1272, %v1278
    %v1294 = vadd.f32 %v1276, %v1278
    %v1295 = vsub.f32 %v1279, %v1198
    %v1296 = vsub.f32 %v1280, %v1199
    %v1297 = vsub.f32 %v1281, %v1200
    %v1298 = vsub.f32 %v1282, %v1201
    %v1299 = vsub.f32 %v1283, %v1202
    %v1300 = vsub.f32 %v1284, %v1203
    %v1301 = vsub.f32 %v1285, %v1204
    %v1302 = vsub.f32 %v1286, %v1205
    %v1303 = vsub.f32 %v1287, %v1206
    %v1304 = vsub.f32 %v1288, %v1207
    %v1305 = vsub.f32 %v1289, %v1208
    %v1306 = vsub.f32 %v1290, %v1209
    %v1307 = vsub.f32 %v1291, %v1210
    %v1308 = vsub.f32 %v1292, %v1211
    %v1309 = vsub.f32 %v1293, %v1212
    %v1310 = vsub.f32 %v1294, %v1213
    %v1311 = vmax.f32 %v812, %v874
    %v1312 = vmax.f32 %v816, %v874
    %v1313 = vmax.f32 %v820, %v874
    %v1314 = vmax.f32 %v824, %v874
    %v1315 = vmax.f32 %v828, %v874
    %v1316 = vmax.f32 %v832, %v874
    %v1317 = vmax.f32 %v836, %v874
    %v1318 = vmax.f32 %v840, %v874
    %v1319 = vmax.f32 %v844, %v874
    %v1320 = vmax.f32 %v848, %v874
    %v1321 = vmax.f32 %v852, %v874
    %v1322 = vmax.f32 %v856, %v874
    %v1323 = vmax.f32 %v860, %v874
    %v1324 = vmax.f32 %v864, %v874
    %v1325 = vmax.f32 %v868, %v874
    %v1326 = vmax.f32 %v872, %v874
    %v1327 = vmin.f32 %v893, %v955
    %v1328 = vmin.f32 %v897, %v955
    %v1329 = vmin.f32 %v901, %v955
    %v1330 = vmin.f32 %v905, %v955
    %v1331 = vmin.f32 %v909, %v955
    %v1332 = vmin.f32 %v913, %v955
    %v1333 = vmin.f32 %v917, %v955
    %v1334 = vmin.f32 %v921, %v955
    %v1335 = vmin.f32 %v925, %v955
    %v1336 = vmin.f32 %v929, %v955
    %v1337 = vmin.f32 %v933, %v955
    %v1338 = vmin.f32 %v937, %v955
    %v1339 = vmin.f32 %v941, %v955
    %v1340 = vmin.f32 %v945, %v955
    %v1341 = vmin.f32 %v949, %v955
    %v1342 = vmin.f32 %v953, %v955
    %v1343 = vsub.f32 %v1311, %v1327
    %v1344 = vsub.f32 %v1312, %v1328
    %v1345 = vsub.f32 %v1313, %v1329
    %v1346 = vsub.f32 %v1314, %v1330
    %v1347 = vsub.f32 %v1315, %v1331
    %v1348 = vsub.f32 %v1316, %v1332
    %v1349 = vsub.f32 %v1317, %v1333
    %v1350 = vsub.f32 %v1318, %v1334
    %v1351 = vsub.f32 %v1319, %v1335
    %v1352 = vsub.f32 %v1320, %v1336
    %v1353 = vsub.f32 %v1321, %v1337
    %v1354 = vsub.f32 %v1322, %v1338
    %v1355 = vsub.f32 %v1323, %v1339
    %v1356 = vsub.f32 %v1324, %v1340
    %v1357 = vsub.f32 %v1325, %v1341
    %v1358 = vsub.f32 %v1326, %v1342
    %v1359 = vmax.f32 %v1006, %v1068
    %v1360 = vmax.f32 %v1010, %v1068
    %v1361 = vmax.f32 %v1014, %v1068
    %v1362 = vmax.f32 %v1018, %v1068
    %v1363 = vmax.f32 %v1022, %v1068
    %v1364 = vmax.f32 %v1026, %v1068
    %v1365 = vmax.f32 %v1030, %v1068
    %v1366 = vmax.f32 %v1034, %v1068
    %v1367 = vmax.f32 %v1038, %v1068
    %v1368 = vmax.f32 %v1042, %v1068
    %v1369 = vmax.f32 %v1046, %v1068
    %v1370 = vmax.f32 %v1050, %v1068
    %v1371 = vmax.f32 %v1054, %v1068
    %v1372 = vmax.f32 %v1058, %v1068
    %v1373 = vmax.f32 %v1062, %v1068
    %v1374 = vmax.f32 %v1066, %v1068
    %v1375 = vmin.f32 %v1087, %v1149
    %v1376 = vmin.f32 %v1091, %v1149
    %v1377 = vmin.f32 %v1095, %v1149
    %v1378 = vmin.f32 %v1099, %v1149
    %v1379 = vmin.f32 %v1103, %v1149
    %v1380 = vmin.f32 %v1107, %v1149
    %v1381 = vmin.f32 %v1111, %v1149
    %v1382 = vmin.f32 %v1115, %v1149
    %v1383 = vmin.f32 %v1119, %v1149
    %v1384 = vmin.f32 %v1123, %v1149
    %v1385 = vmin.f32 %v1127, %v1149
    %v1386 = vmin.f32 %v1131, %v1149
    %v1387 = vmin.f32 %v1135, %v1149
    %v1388 = vmin.f32 %v1139, %v1149
    %v1389 = vmin.f32 %v1143, %v1149
    %v1390 = vmin.f32 %v1147, %v1149
    %v1391 = vsub.f32 %v1359, %v1375
    %v1392 = vsub.f32 %v1360, %v1376
    %v1393 = vsub.f32 %v1361, %v1377
    %v1394 = vsub.f32 %v1362, %v1378
    %v1395 = vsub.f32 %v1363, %v1379
    %v1396 = vsub.f32 %v1364, %v1380
    %v1397 = vsub.f32 %v1365, %v1381
    %v1398 = vsub.f32 %v1366, %v1382
    %v1399 = vsub.f32 %v1367, %v1383
    %v1400 = vsub.f32 %v1368, %v1384
    %v1401 = vsub.f32 %v1369, %v1385
    %v1402 = vsub.f32 %v1370, %v1386
    %v1403 = vsub.f32 %v1371, %v1387
    %v1404 = vsub.f32 %v1372, %v1388
    %v1405 = vsub.f32 %v1373, %v1389
    %v1406 = vsub.f32 %v1374, %v1390
    %v1407 = vmul.f32 %v1343, %v1391
    %v1408 = vmul.f32 %v1344, %v1392
    %v1409 = vmul.f32 %v1345, %v1393
    %v1410 = vmul.f32 %v1346, %v1394
    %v1411 = vmul.f32 %v1347, %v1395
    %v1412 = vmul.f32 %v1348, %v1396
    %v1413 = vmul.f32 %v1349, %v1397
    %v1414 = vmul.f32 %v1350, %v1398
    %v1415 = vmul.f32 %v1351, %v1399
    %v1416 = vmul.f32 %v1352, %v1400
    %v1417 = vmul.f32 %v1353, %v1401
    %v1418 = vmul.f32 %v1354, %v1402
    %v1419 = vmul.f32 %v1355, %v1403
    %v1420 = vmul.f32 %v1356, %v1404
    %v1421 = vmul.f32 %v1357, %v1405
    %v1422 = vmul.f32 %v1358, %v1406
    %v1423 = vrcp.pop %v1295
    %v1424 = vrcp.pop %v1296
    %v1425 = vrcp.pop %v1297
    %v1426 = vrcp.pop %v1298
    %v1427 = vrcp.pop %v1299
    %v1428 = vrcp.pop %v1300
    %v1429 = vrcp.pop %v1301
    %v1430 = vrcp.pop %v1302
    %v1431 = vrcp.pop %v1303
    %v1432 = vrcp.pop %v1304
    %v1433 = vrcp.pop %v1305
    %v1434 = vrcp.pop %v1306
    %v1435 = vrcp.pop %v1307
    %v1436 = vrcp.pop %v1308
    %v1437 = vrcp.pop %v1309
    %v1438 = vrcp.pop %v1310
    %v1439 = vmul.f32 %v1198, %v1423
    %v1440 = vmul.f32 %v1199, %v1424
    %v1441 = vmul.f32 %v1200, %v1425
    %v1442 = vmul.f32 %v1201, %v1426
    %v1443 = vmul.f32 %v1202, %v1427
    %v1444 = vmul.f32 %v1203, %v1428
    %v1445 = vmul.f32 %v1204, %v1429
    %v1446 = vmul.f32 %v1205, %v1430
    %v1447 = vmul.f32 %v1206, %v1431
    %v1448 = vmul.f32 %v1207, %v1432
    %v1449 = vmul.f32 %v1208, %v1433
    %v1450 = vmul.f32 %v1209, %v1434
    %v1451 = vmul.f32 %v1210, %v1435
    %v1452 = vmul.f32 %v1211, %v1436
    %v1453 = vmul.f32 %v1212, %v1437
    %v1454 = vmul.f32 %v1213, %v1438
    %v1455 = vsub.f32 %v1407, %v1295
    %v1456 = vsub.f32 %v1408, %v1296
    %v1457 = vsub.f32 %v1409, %v1297
    %v1458 = vsub.f32 %v1410, %v1298
    %v1459 = vsub.f32 %v1411, %v1299
    %v1460 = vsub.f32 %v1412, %v1300
    %v1461 = vsub.f32 %v1413, %v1301
    %v1462 = vsub.f32 %v1414, %v1302
    %v1463 = vsub.f32 %v1415, %v1303
    %v1464 = vsub.f32 %v1416, %v1304
    %v1465 = vsub.f32 %v1417, %v1305
    %v1466 = vsub.f32 %v1418, %v1306
    %v1467 = vsub.f32 %v1419, %v1307
    %v1468 = vsub.f32 %v1420, %v1308
    %v1469 = vsub.f32 %v1421, %v1309
    %v1470 = vsub.f32 %v1422, %v1310
    %v1471 = vrcp.pop %v1407
    %v1472 = vrcp.pop %v1408
    %v1473 = vrcp.pop %v1409
    %v1474 = vrcp.pop %v1410
    %v1475 = vrcp.pop %v1411
    %v1476 = vrcp.pop %v1412
    %v1477 = vrcp.pop %v1413
    %v1478 = vrcp.pop %v1414
    %v1479 = vrcp.pop %v1415
    %v1480 = vrcp.pop %v1416
    %v1481 = vrcp.pop %v1417
    %v1482 = vrcp.pop %v1418
    %v1483 = vrcp.pop %v1419
    %v1484 = vrcp.pop %v1420
    %v1485 = vrcp.pop %v1421
    %v1486 = vrcp.pop %v1422
    %v1487 = vmul.f32 %v1455, %v1471
    %v1488 = vmul.f32 %v1456, %v1472
    %v1489 = vmul.f32 %v1457, %v1473
    %v1490 = vmul.f32 %v1458, %v1474
    %v1491 = vmul.f32 %v1459, %v1475
    %v1492 = vmul.f32 %v1460, %v1476
    %v1493 = vmul.f32 %v1461, %v1477
    %v1494 = vmul.f32 %v1462, %v1478
    %v1495 = vmul.f32 %v1463, %v1479
    %v1496 = vmul.f32 %v1464, %v1480
    %v1497 = vmul.f32 %v1465, %v1481
    %v1498 = vmul.f32 %v1466, %v1482
    %v1499 = vmul.f32 %v1467, %v1483
    %v1500 = vmul.f32 %v1468, %v1484
    %v1501 = vmul.f32 %v1469, %v1485
    %v1502 = vmul.f32 %v1470, %v1486
    %v1503 = vsub.f32 %v1487, %v1439
    %v1504 = vsub.f32 %v1488, %v1440
    %v1505 = vsub.f32 %v1489, %v1441
    %v1506 = vsub.f32 %v1490, %v1442
    %v1507 = vsub.f32 %v1491, %v1443
    %v1508 = vsub.f32 %v1492, %v1444
    %v1509 = vsub.f32 %v1493, %v1445
    %v1510 = vsub.f32 %v1494, %v1446
    %v1511 = vsub.f32 %v1495, %v1447
    %v1512 = vsub.f32 %v1496, %v1448
    %v1513 = vsub.f32 %v1497, %v1449
    %v1514 = vsub.f32 %v1498, %v1450
    %v1515 = vsub.f32 %v1499, %v1451
    %v1516 = vsub.f32 %v1500, %v1452
    %v1517 = vsub.f32 %v1501, %v1453
    %v1518 = vsub.f32 %v1502, %v1454
    %vm1519 = vcmask 130048
    %v1521 = vsel %vm1519, %v112, 0
    %v1524 = vsel %vm1519, %v127, 0
    %v1527 = vsel %vm1519, %v142, 0
    %v1530 = vsel %vm1519, %v157, 0
    %v1533 = vsel %vm1519, %v172, 0
    %v1536 = vsel %vm1519, %v187, 0
    %v1539 = vsel %vm1519, %v202, 0
    %v1542 = vsel %vm1519, %v217, 0
    %v1545 = vsel %vm1519, %v232, 0
    %v1548 = vsel %vm1519, %v247, 0
    %v1551 = vsel %vm1519, %v262, 0
    %v1554 = vsel %vm1519, %v277, 0
    %v1557 = vsel %vm1519, %v292, 0
    %v1560 = vsel %vm1519, %v307, 0
    %v1563 = vsel %vm1519, %v322, 0
    %v1566 = vsel %vm1519, %v337, 0
    %1568 = vmatpush.msra.mxu0 0.0
    %1569 = vmatpush.msra.mxu0 0.0
    %1570 = vmatpush.msra.mxu0 0.0
    %1571 = vmatpush.msra.mxu0 0.0
    %1572 = vmatpush.msra.mxu0 0.0
    %1573 = vmatpush.msra.mxu0 0.0
    %1574 = vmatpush.msra.mxu0 0.0
    %1575 = vmatpush.msra.mxu0 0.0
    %1576 = vmatpush.msra.mxu0 0.0
    %1577 = vmatpush.msra.mxu0 0.0
    %1578 = vmatpush.msra.mxu0 0.0
    %1579 = vmatpush.msra.mxu0 0.0
    %1580 = vmatpush.msra.mxu0 0.0
    %1581 = vmatpush.msra.mxu0 0.0
    %1582 = vmatpush.msra.mxu0 %v339
    %1583 = vmatpush.msra.mxu0 %v338
    %1584 = vmatmul.f32.gmra.mxu0 %v1521
    %v1585 = vpop.f32.mrf.mxu0
    %v1586 = vadd.f32 %v794, %v1585
    %1587 = vmatmul.f32.gmra.mxu0 %v1524
    %v1588 = vpop.f32.mrf.mxu0
    %v1589 = vadd.f32 %v795, %v1588
    %1590 = vmatmul.f32.gmra.mxu0 %v1527
    %v1591 = vpop.f32.mrf.mxu0
    %v1592 = vadd.f32 %v796, %v1591
    %1593 = vmatmul.f32.gmra.mxu0 %v1530
    %v1594 = vpop.f32.mrf.mxu0
    %v1595 = vadd.f32 %v797, %v1594
    %1596 = vmatmul.f32.gmra.mxu0 %v1533
    %v1597 = vpop.f32.mrf.mxu0
    %v1598 = vadd.f32 %v798, %v1597
    %1599 = vmatmul.f32.gmra.mxu0 %v1536
    %v1600 = vpop.f32.mrf.mxu0
    %v1601 = vadd.f32 %v799, %v1600
    %1602 = vmatmul.f32.gmra.mxu0 %v1539
    %v1603 = vpop.f32.mrf.mxu0
    %v1604 = vadd.f32 %v800, %v1603
    %1605 = vmatmul.f32.gmra.mxu0 %v1542
    %v1606 = vpop.f32.mrf.mxu0
    %v1607 = vadd.f32 %v801, %v1606
    %1608 = vmatmul.f32.gmra.mxu0 %v1545
    %v1609 = vpop.f32.mrf.mxu0
    %v1610 = vadd.f32 %v802, %v1609
    %1611 = vmatmul.f32.gmra.mxu0 %v1548
    %v1612 = vpop.f32.mrf.mxu0
    %v1613 = vadd.f32 %v803, %v1612
    %1614 = vmatmul.f32.gmra.mxu0 %v1551
    %v1615 = vpop.f32.mrf.mxu0
    %v1616 = vadd.f32 %v804, %v1615
    %1617 = vmatmul.f32.gmra.mxu0 %v1554
    %v1618 = vpop.f32.mrf.mxu0
    %v1619 = vadd.f32 %v805, %v1618
    %1620 = vmatmul.f32.gmra.mxu0 %v1557
    %v1621 = vpop.f32.mrf.mxu0
    %v1622 = vadd.f32 %v806, %v1621
    %1623 = vmatmul.f32.gmra.mxu0 %v1560
    %v1624 = vpop.f32.mrf.mxu0
    %v1625 = vadd.f32 %v807, %v1624
    %1626 = vmatmul.f32.gmra.mxu0 %v1563
    %v1627 = vpop.f32.mrf.mxu0
    %v1628 = vadd.f32 %v808, %v1627
    %1629 = vmatmul.f32.gmra.mxu0 %v1566
    %v1630 = vpop.f32.mrf.mxu0
    %v1631 = vadd.f32 %v809, %v1630
    %1632 = vdwg.mxu0
    %v1633 = vadd.f32 %v1586, %v1503
    %v1634 = vadd.f32 %v1589, %v1504
    %v1635 = vadd.f32 %v1592, %v1505
    %v1636 = vadd.f32 %v1595, %v1506
    %v1637 = vadd.f32 %v1598, %v1507
    %v1638 = vadd.f32 %v1601, %v1508
    %v1639 = vadd.f32 %v1604, %v1509
    %v1640 = vadd.f32 %v1607, %v1510
    %v1641 = vadd.f32 %v1610, %v1511
    %v1642 = vadd.f32 %v1613, %v1512
    %v1643 = vadd.f32 %v1616, %v1513
    %v1644 = vadd.f32 %v1619, %v1514
    %v1645 = vadd.f32 %v1622, %v1515
    %v1646 = vadd.f32 %v1625, %v1516
    %v1647 = vadd.f32 %v1628, %v1517
    %v1648 = vadd.f32 %v1631, %v1518
    %1649 = vst [vmem:[#allocation2] sm:$0xff] %v1633
    %1650 = vst [vmem:[#allocation2 + $0x8] sm:$0xff] %v1634
    %1651 = vst [vmem:[#allocation2 + $0x10] sm:$0xff] %v1635
    %1652 = vst [vmem:[#allocation2 + $0x18] sm:$0xff] %v1636
    %1653 = vst [vmem:[#allocation2 + $0x20] sm:$0xff] %v1637
    %1654 = vst [vmem:[#allocation2 + $0x28] sm:$0xff] %v1638
    %1655 = vst [vmem:[#allocation2 + $0x30] sm:$0xff] %v1639
    %1656 = vst [vmem:[#allocation2 + $0x38] sm:$0xff] %v1640
    %1657 = vst [vmem:[#allocation2 + $0x40] sm:$0xff] %v1641
    %1658 = vst [vmem:[#allocation2 + $0x48] sm:$0xff] %v1642
    %1659 = vst [vmem:[#allocation2 + $0x50] sm:$0xff] %v1643
    %1660 = vst [vmem:[#allocation2 + $0x58] sm:$0xff] %v1644
    %1661 = vst [vmem:[#allocation2 + $0x60] sm:$0xff] %v1645
    %1662 = vst [vmem:[#allocation2 + $0x68] sm:$0xff] %v1646
    %1663 = vst [vmem:[#allocation2 + $0x70] sm:$0xff] %v1647
    %1664 = vst [vmem:[#allocation2 + $0x78] sm:$0xff] %v1648
    // Predicated region
    $region18: #{tpu_custom_call.1} parent=1 // pred_check
      _
    $region19: #{tpu_custom_call.1} parent=1 // pred_check_branch
      %1666 = sbr.rel (0) target = $region21
    $region20: #{tpu_custom_call.1} parent=1 // pred_region
      %1668 = vsyncadd [#allocation3], 0
      %s1669 = sshll.u32 [#allocation2], 4
      %s1670 = int_to_ptr.vmem [resolvable:$true] %s1669
      %s1671 = sshll.u32 %s4, 4
      %s1672 = int_to_ptr.hbm [resolvable:$true] %s1671
      %1677 = dma.vmem_to_hbm [thread:$0]  %s1670, 2048, %s1672, [#allocation3], 128, 128, 8
    $region21: #{tpu_custom_call.1} parent=1 // pred_fallthru
      _
    // Predicated region
    $region22: #{tpu_custom_call.1} parent=1 // pred_check
      _
    $region23: #{tpu_custom_call.1} parent=1 // pred_check_branch
      %1679 = sbr.rel (0) target = $region25
    $region24: #{tpu_custom_call.1} parent=1 // pred_region
      %1681 = dma.done [#allocation3], 2048
    $region25: #{tpu_custom_call.1} parent=1 // pred_fallthru
      _
    %1682 = vsyncpa [#allocation3], 1

</llo_original>
